<compile_context>
chip_gen: v5e
topology: v5e:2x2
jax: 0.10.0
libtpu: 0.0.40
codegen_flags: <defaults>
</compile_context>

<pallas_src>
import functools

import jax
import jax.numpy as jnp
from jax import lax
from jax.experimental import pallas as pl
from jax.experimental.pallas import tpu as pltpu


def _corr_kernel(s_ref, t_ref, o_ref, colsum_ref, ecache_ref, *,
                 inv_temp, cache_e, matmul_dtype):
    p = pl.program_id(1)   # 0: accumulate column sums, 1: normalize + write
    m = pl.program_id(2)   # query (M) tile index
    tm = s_ref.shape[1]

    @pl.when((p == 0) & (m == 0))
    def _():
        colsum_ref[...] = jnp.zeros_like(colsum_ref)

    def compute_e():
        # L2-normalize the source rows in f32, fold in 1/temperature, then
        # cast to the MXU dtype (bf16 by default).  Target arrives already
        # normalized and in matmul_dtype from the wrapper.
        s = s_ref[0].astype(jnp.float32)                       # (TM, C)
        s_ss = jnp.sum(s * s, axis=1, keepdims=True)           # (TM, 1)
        # eps only guards all-zero descriptors (original module has no eps).
        s_n = s * (lax.rsqrt(jnp.maximum(s_ss, 1e-24)) * inv_temp)
        sim = lax.dot_general(
            s_n.astype(matmul_dtype), t_ref[0],
            dimension_numbers=(((1,), (0,)), ((), ())),
            preferred_element_type=jnp.float32,
        )                                                      # (TM, N)
        # Both softmaxes are shift-invariant and |sim| <~ 1/T for unit-norm
        # descriptors, so a constant shift keeps exp(...) <~ 1 (no row/col
        # max reductions needed for the module's fixed T = 0.1).
        return jnp.exp(sim - inv_temp)

    def write_tile(e):
        @pl.when(m == 0)
        def _():
            # Once per batch: overwrite the column sums with their
            # reciprocal (EUP, nearly free) instead of per-tile divides.
            colsum_ref[...] = pl.reciprocal(colsum_ref[...], approx=True)
        inv_row = pl.reciprocal(jnp.sum(e, axis=1, keepdims=True),
                                approx=True)                   # (TM, 1)
        # softmax(dim=2) * softmax(dim=1)
        o_ref[0] = ((e * inv_row) * (e * colsum_ref[...])).astype(o_ref.dtype)

    if cache_e:
        # Single matmul+exp per tile: pass 0 stores e in the resident VMEM
        # cache, pass 1 only normalizes from the cache.
        @pl.when(p == 0)
        def _():
            e = compute_e()
            colsum_ref[...] += jnp.sum(e, axis=0, keepdims=True)
            start = pl.multiple_of(m * tm, 8)
            ecache_ref[pl.ds(start, tm), :] = e.astype(ecache_ref.dtype)

        @pl.when(p == 1)
        def _():
            start = pl.multiple_of(m * tm, 8)
            write_tile(ecache_ref[pl.ds(start, tm), :].astype(jnp.float32))
    else:
        # Fallback (exp matrix does not fit VMEM): recompute e in pass 1.
        e = compute_e()

        @pl.when(p == 0)
        def _():
            colsum_ref[...] += jnp.sum(e, axis=0, keepdims=True)

        @pl.when(p == 1)
        def _():
            write_tile(e)


def _choose_tm(hw, c, *, budget_bytes, out_bytes, src_bytes=4, tmp_bytes=4):
    """Largest M tile that divides HW, is MXU/sublane friendly and keeps the
    per-tile VMEM footprint under the (dtype-aware) budget."""
    def per_tile_bytes(tmc):
        out_b = 2 * tmc * hw * out_bytes       # double-buffered output block
        tmp_b = 2 * tmc * hw * tmp_bytes       # sim / exp f32 temporaries
        src_b = 2 * tmc * c * src_bytes        # double-buffered source block
        return out_b + tmp_b + src_b

    # Prefer multiples of 128 (clean MXU / lane tiles), then 16 (bf16 sublane
    # packing), then 8; fall back to the full extent (always a legal block).
    steps = (128, 16, 8) if out_bytes >= 4 else (128, 16)
    cands = []
    for step in steps:
        cands = [d for d in range(step, hw + 1, step) if hw % d == 0]
        if cands:
            break
    if not cands:
        return hw
    for tmc in sorted(cands, reverse=True):
        if per_tile_bytes(tmc) <= budget_bytes:
            return tmc
    return cands[0]                            # best effort: smallest legal


def correspondence_module(source_desc, target_desc, temperature=0.1, *,
                          tm=None, matmul_dtype=jnp.bfloat16,
                          out_dtype=jnp.float32, cache_e=None):
    """Equivalent of CorrespondenceModule(match_type='dual_softmax').forward.

    matmul_dtype=bf16 (default) runs the MXU at native rate with f32
    accumulation; out_dtype=bf16 halves the dominant HW^2 HBM writeback if
    the consumer tolerates it (default f32 for module parity).
    """
    b, c, h, w = source_desc.shape
    hw = h * w

    if 2.0 / temperature > 60.0:
        # The constant-shift exp (no per-row/col max) needs a bounded 2/T;
        # the module fixes T = 0.1 so this never triggers in practice.
        raise ValueError("temperature too small for the constant-shift exp "
                         "(supported: temperature >= ~0.034; module uses 0.1)")

    # --- VMEM budget, generation-aware (64 MiB on v7x, 128 MiB v5e/v6e). ---
    try:
        phys_vmem = int(pltpu.get_tpu_info().vmem_capacity_bytes)
    except Exception:
        phys_vmem = 64 * 1024 * 1024           # conservative fallback (v7x)
    vmem_limit = min(phys_vmem * 3 // 4, phys_vmem - 12 * 1024 * 1024)

    matmul_bytes = jnp.dtype(matmul_dtype).itemsize
    out_bytes = jnp.dtype(out_dtype).itemsize

    # --- Keep the full exp(sim) matrix resident in VMEM if it fits ---------
    # (removes the duplicate matmul + exp of pass 1; key v7x lever).
    cache_dtype = None
    if cache_e is None or cache_e:
        for cd in (jnp.float32, jnp.bfloat16):
            if hw * hw * jnp.dtype(cd).itemsize <= vmem_limit // 2:
                cache_dtype = cd
                break
    if cache_e and cache_dtype is None:
        raise ValueError("cache_e=True requested but exp(sim) does not fit VMEM")
    use_cache = cache_dtype is not None
    cache_bytes = (hw * hw * jnp.dtype(cache_dtype).itemsize if use_cache
                   else 8 * 128 * 4)           # dummy scratch when disabled

    # --- Tile choice: fixed (batch-resident) bytes + per-tile budget -------
    fixed = 2 * c * hw * matmul_bytes          # target block double-buffer
    fixed += 8 * hw * 4                        # colsum scratch (sublane pad)
    fixed += cache_bytes
    if tm is None:
        tm = _choose_tm(hw, c, budget_bytes=max(vmem_limit - fixed, 0),
                        out_bytes=out_bytes)
    assert hw % tm == 0 and (tm % 8 == 0 or tm == hw), \
        f"tm={tm} must divide H*W={hw} and be a multiple of 8"
    num_m = hw // tm

    # --- Wrapper-side data prep --------------------------------------------
    # Source as (B, HW, C): the MXU contracts on the LHS last dim (no
    # in-kernel XLU transpose).  Normalization of the source stays in-kernel
    # so the bf16 cast happens after the f32 rsqrt.
    # TODO(synk): if the producer can emit (B, HW, C) directly, this
    # transpose (a standalone B*C*HW HBM round-trip) disappears.
    s = jnp.transpose(source_desc.reshape(b, c, hw), (0, 2, 1)).astype(jnp.float32)
    # Target: L2-normalize over C here (fuses into the surrounding XLA graph)
    # and hand the kernel matmul-dtype data -> no (C, HW) tnorm scratch.
    t32 = target_desc.reshape(b, c, hw).astype(jnp.float32)
    t32 = t32 * lax.rsqrt(jnp.maximum(jnp.sum(t32 * t32, axis=1, keepdims=True),
                                      1e-24))
    t = t32.astype(matmul_dtype)

    if use_cache:
        # Pass 1 never reads the source; pin its block so no extra DMAs run.
        src_map = lambda bi, p, mi: (bi, mi * (1 - p), 0)
    else:
        src_map = lambda bi, p, mi: (bi, mi, 0)

    matmul_passes = 1 if use_cache else 2
    cost = pl.CostEstimate(
        flops=int(2 * b * matmul_passes * hw * hw * c),
        transcendentals=int(b * matmul_passes * hw * hw),
        bytes_accessed=int(b * hw * c * 4 + b * c * hw * matmul_bytes
                           + b * hw * hw * out_bytes),
    )

    kernel = functools.partial(_corr_kernel, inv_temp=1.0 / temperature,
                               cache_e=use_cache, matmul_dtype=matmul_dtype)

    # TODO(synk): for B == 1 on v7x megacore, the M-tile axis could be split
    # across the two TensorCores with the column sums combined via
    # VMEM_SHARED + core_barrier; not implemented here.
    return pl.pallas_call(
        kernel,
        out_shape=jax.ShapeDtypeStruct((b, hw, hw), out_dtype),
        grid_spec=pltpu.PrefetchScalarGridSpec(
            num_scalar_prefetch=0,
            # (batch, pass, M tile): pass 0 accumulates column sums (and the
            # e cache when enabled), pass 1 normalizes and writes.
            grid=(b, 2, num_m),
            in_specs=[
                pl.BlockSpec((1, tm, c), src_map),
                # Resident (once per batch) normalized target block.
                # TODO(synk): single-buffering this block (its index only
                # changes on batch boundaries) would reclaim C*HW*bytes more
                # VMEM on v7x.
                pl.BlockSpec((1, c, hw), lambda bi, p, mi: (bi, 0, 0)),
            ],
            # During pass 0 the output block index is pinned to (b, 0) so no
            # unwritten buffer is flushed to HBM; pass 1 walks the M tiles.
            out_specs=pl.BlockSpec((1, tm, hw),
                                   lambda bi, p, mi: (bi, mi * p, 0)),
            scratch_shapes=[
                pltpu.VMEM((1, hw), jnp.float32),               # column sums
                pltpu.VMEM((hw, hw) if use_cache else (8, 128),
                           cache_dtype if use_cache else jnp.float32),
            ],
        ),
        compiler_params=pltpu.CompilerParams(
            # Batch axis shards across TensorCores; pass / M axes carry the
            # column-sum reduction -> arbitrary.
            dimension_semantics=("parallel", "arbitrary", "arbitrary"),
            vmem_limit_bytes=int(vmem_limit),
        ),
        cost_estimate=cost,
    )(s, t)


def _reference(source_desc, target_desc, temperature=0.1):
    b, c, h, w = source_desc.shape
    s = source_desc / jnp.linalg.norm(source_desc, axis=1, keepdims=True)
    t = target_desc / jnp.linalg.norm(target_desc, axis=1, keepdims=True)
    s = s.reshape(b, c, h * w)
    t = t.reshape(b, c, h * w)
    sim = jnp.einsum('bcm,bcn->bmn', s, t) / temperature
    return jax.nn.softmax(sim, axis=1) * jax.nn.softmax(sim, axis=2)


if __name__ == "__main__":
    key = jax.random.PRNGKey(0)
    k1, k2 = jax.random.split(key)
    B, C, H, W = 2, 4, 16, 16
    source = jax.random.normal(k1, (B, C, H, W), dtype=jnp.float32)
    target = jax.random.normal(k2, (B, C, H, W), dtype=jnp.float32)

    ref = _reference(source, target)

    # 1) f32 MXU, auto tile + resident e cache: tight parity with reference.
    conf_f32 = jax.block_until_ready(
        correspondence_module(source, target, matmul_dtype=jnp.float32))
    assert conf_f32.shape == (B, H * W, H * W)
    assert bool(jnp.all(jnp.isfinite(conf_f32)))
    assert jnp.allclose(conf_f32, ref, atol=2e-3, rtol=2e-2), (
        "max|diff|=%g" % float(jnp.max(jnp.abs(conf_f32 - ref))))

    # 2) f32 MXU, forced multi-tile + two-pass recompute (cache disabled):
    #    exercises the column-sum reduction / recompute fallback path.
    conf_2p = jax.block_until_ready(
        correspondence_module(source, target, matmul_dtype=jnp.float32,
                              tm=64, cache_e=False))
    assert jnp.allclose(conf_2p, ref, atol=2e-3, rtol=2e-2), (
        "max|diff|=%g" % float(jnp.max(jnp.abs(conf_2p - ref))))

    # 3) Default config (bf16 MXU, auto tile/cache): sanity check only --
    #    bf16 inputs at C=4 give a few-percent error; fine for matching.
    conf = jax.block_until_ready(correspondence_module(source, target))
    assert bool(jnp.all(jnp.isfinite(conf)))
    assert jnp.allclose(conf, ref, atol=0.35)

    # 4) bf16 output + multi-tile with the e cache (dynamic-offset store/load).
    conf_b = jax.block_until_ready(
        correspondence_module(source, target, tm=128, out_dtype=jnp.bfloat16))
    assert bool(jnp.all(jnp.isfinite(conf_b)))
    assert jnp.allclose(conf_b.astype(jnp.float32), ref, atol=0.35)

    print("KERNEL_OK")
</pallas_src>

<mosaic_0001>
module attributes {stable_mosaic.version = 11 : i64} {
  func.func @_corr_kernel(%arg0: i32, %arg1: i32, %arg2: i32, %arg3: memref<1x256x4xf32, #tpu.memory_space<vmem>>, %arg4: memref<1x4x256xf32, #tpu.memory_space<vmem>>, %arg5: memref<1x256x256xf32, #tpu.memory_space<vmem>>, %arg6: memref<1x256xf32, #tpu.memory_space<vmem>>, %arg7: memref<256x256xf32, #tpu.memory_space<vmem>>) attributes {dimension_semantics = [#tpu.dimension_semantics<parallel>, #tpu.dimension_semantics<arbitrary>, #tpu.dimension_semantics<arbitrary>], iteration_bounds = array<i64: 2, 2, 1>, scalar_prefetch = 0 : i64, scratch_operands = 2 : i64, tpu.core_type = #tpu.core_type<tc>, window_params = [{transform_indices = @transform_0, window_bounds = array<i64: 1, 256, 4>}, {transform_indices = @transform_1, window_bounds = array<i64: 1, 4, 256>}, {transform_indices = @transform_2, window_bounds = array<i64: 1, 256, 256>}]} {
    %c0_i32 = arith.constant 0 : i32
    %0 = arith.cmpi eq, %arg1, %c0_i32 : i32
    %c0_i32_0 = arith.constant 0 : i32
    %1 = arith.cmpi eq, %arg2, %c0_i32_0 : i32
    %2 = arith.andi %0, %1 : i1
    %3 = arith.extui %2 : i1 to i32
    %c0_i32_1 = arith.constant 0 : i32
    %4 = arith.cmpi ne, %3, %c0_i32_1 : i32
    scf.if %4 {
      %cst = arith.constant 0.000000e+00 : f32
      %11 = vector.broadcast %cst : f32 to vector<1x256xf32>
      %c0 = arith.constant 0 : index
      %c0_5 = arith.constant 0 : index
      %12 = vector.load %arg6[%c0, %c0_5] : memref<1x256xf32, #tpu.memory_space<vmem>>, vector<1x256xf32>
      tpu.vector_store %arg6[%c0, %c0_5], %11 {strides = array<i32>} : memref<1x256xf32, #tpu.memory_space<vmem>>, vector<1x256xf32>,
    } else {
    }
    %c0_i32_2 = arith.constant 0 : i32
    %5 = arith.cmpi eq, %arg1, %c0_i32_2 : i32
    %6 = arith.extui %5 : i1 to i32
    %c0_i32_3 = arith.constant 0 : i32
    %7 = arith.cmpi ne, %6, %c0_i32_3 : i32
    scf.if %7 {
      %c0 = arith.constant 0 : index
      %c0_5 = arith.constant 0 : index
      %c0_6 = arith.constant 0 : index
      %11 = vector.load %arg3[%c0, %c0_5, %c0_6] : memref<1x256x4xf32, #tpu.memory_space<vmem>>, vector<1x256x4xf32>
      %12 = vector.shape_cast %11 : vector<1x256x4xf32> to vector<256x4xf32>
      %13 = arith.mulf %12, %12 : vector<256x4xf32>
      %cst = arith.constant dense<0.000000e+00> : vector<256xf32>
      %14 = vector.multi_reduction <add>, %13, %cst [1] : vector<256x4xf32> to vector<256xf32>
      %15 = vector.shape_cast %14 : vector<256xf32> to vector<256x1xf32>
      %cst_7 = arith.constant 1.000000e-24 : f32
      %16 = vector.broadcast %cst_7 : f32 to vector<256x1xf32>
      %17 = arith.maximumf %15, %16 : vector<256x1xf32>
      %18 = math.rsqrt %17 : vector<256x1xf32>
      %cst_8 = arith.constant 1.000000e+01 : f32
      %19 = vector.broadcast %cst_8 : f32 to vector<256x1xf32>
      %20 = arith.mulf %18, %19 : vector<256x1xf32>
      %21 = vector.broadcast %20 : vector<256x1xf32> to vector<256x4xf32>
      %22 = arith.mulf %12, %21 : vector<256x4xf32>
      %c0_9 = arith.constant 0 : index
      %c0_10 = arith.constant 0 : index
      %c0_11 = arith.constant 0 : index
      %23 = vector.load %arg4[%c0_9, %c0_10, %c0_11] : memref<1x4x256xf32, #tpu.memory_space<vmem>>, vector<1x4x256xf32>
      %24 = vector.shape_cast %23 : vector<1x4x256xf32> to vector<4x256xf32>
      %cst_12 = arith.constant dense<0.000000e+00> : vector<256x256xf32>
      %25 = tpu.matmul %22, %24, %cst_12 {dimension_numbers = #tpu.dot_dimension_numbers<[1], [0], [0], [1], [0, 0, 1, 1], [], []>} : vector<256x4xf32>, vector<4x256xf32>, vector<256x256xf32> -> vector<256x256xf32>
      %cst_13 = arith.constant 1.000000e+01 : f32
      %26 = vector.broadcast %cst_13 : f32 to vector<256x256xf32>
      %27 = arith.subf %25, %26 : vector<256x256xf32>
      %28 = math.exp %27 : vector<256x256xf32>
      %c0_14 = arith.constant 0 : index
      %c0_15 = arith.constant 0 : index
      %29 = vector.load %arg6[%c0_14, %c0_15] : memref<1x256xf32, #tpu.memory_space<vmem>>, vector<1x256xf32>
      %cst_16 = arith.constant dense<0.000000e+00> : vector<256xf32>
      %30 = vector.multi_reduction <add>, %28, %cst_16 [0] : vector<256x256xf32> to vector<256xf32>
      %31 = vector.shape_cast %30 : vector<256xf32> to vector<1x256xf32>
      %32 = arith.addf %29, %31 : vector<1x256xf32>
      %c0_17 = arith.constant 0 : index
      %c0_18 = arith.constant 0 : index
      %33 = vector.load %arg6[%c0_17, %c0_18] : memref<1x256xf32, #tpu.memory_space<vmem>>, vector<1x256xf32>
      tpu.vector_store %arg6[%c0_17, %c0_18], %32 {strides = array<i32>} : memref<1x256xf32, #tpu.memory_space<vmem>>, vector<1x256xf32>,
      %c256_i32 = arith.constant 256 : i32
      %34 = arith.muli %arg2, %c256_i32 : i32
      %35 = tpu.assume_multiple %34, 8 : i32
      %36 = arith.index_cast %35 : i32 to index
      %c0_19 = arith.constant 0 : index
      %37 = vector.load %arg7[%36, %c0_19] : memref<256x256xf32, #tpu.memory_space<vmem>>, vector<256x256xf32>
      tpu.vector_store %arg7[%36, %c0_19], %28 {strides = array<i32>} : memref<256x256xf32, #tpu.memory_space<vmem>>, vector<256x256xf32>,
    } else {
    }
    %c1_i32 = arith.constant 1 : i32
    %8 = arith.cmpi eq, %arg1, %c1_i32 : i32
    %9 = arith.extui %8 : i1 to i32
    %c0_i32_4 = arith.constant 0 : i32
    %10 = arith.cmpi ne, %9, %c0_i32_4 : i32
    scf.if %10 {
      %c256_i32 = arith.constant 256 : i32
      %11 = arith.muli %arg2, %c256_i32 : i32
      %12 = tpu.assume_multiple %11, 8 : i32
      %13 = arith.index_cast %12 : i32 to index
      %c0 = arith.constant 0 : index
      %14 = vector.load %arg7[%13, %c0] : memref<256x256xf32, #tpu.memory_space<vmem>>, vector<256x256xf32>
      %c0_i32_5 = arith.constant 0 : i32
      %15 = arith.cmpi eq, %arg2, %c0_i32_5 : i32
      %16 = arith.extui %15 : i1 to i32
      %c0_i32_6 = arith.constant 0 : i32
      %17 = arith.cmpi ne, %16, %c0_i32_6 : i32
      scf.if %17 {
        %c0_12 = arith.constant 0 : index
        %c0_13 = arith.constant 0 : index
        %30 = vector.load %arg6[%c0_12, %c0_13] : memref<1x256xf32, #tpu.memory_space<vmem>>, vector<1x256xf32>
        %31 = tpu.reciprocal %30 {approx = true} : vector<1x256xf32> -> vector<1x256xf32>
        %c0_14 = arith.constant 0 : index
        %c0_15 = arith.constant 0 : index
        %32 = vector.load %arg6[%c0_14, %c0_15] : memref<1x256xf32, #tpu.memory_space<vmem>>, vector<1x256xf32>
        tpu.vector_store %arg6[%c0_14, %c0_15], %31 {strides = array<i32>} : memref<1x256xf32, #tpu.memory_space<vmem>>, vector<1x256xf32>,
      } else {
      }
      %cst = arith.constant dense<0.000000e+00> : vector<256xf32>
      %18 = vector.multi_reduction <add>, %14, %cst [1] : vector<256x256xf32> to vector<256xf32>
      %19 = vector.shape_cast %18 : vector<256xf32> to vector<256x1xf32>
      %20 = tpu.reciprocal %19 {approx = true} : vector<256x1xf32> -> vector<256x1xf32>
      %21 = vector.broadcast %20 : vector<256x1xf32> to vector<256x256xf32>
      %22 = arith.mulf %14, %21 : vector<256x256xf32>
      %c0_7 = arith.constant 0 : index
      %c0_8 = arith.constant 0 : index
      %23 = vector.load %arg6[%c0_7, %c0_8] : memref<1x256xf32, #tpu.memory_space<vmem>>, vector<1x256xf32>
      %24 = vector.broadcast %23 : vector<1x256xf32> to vector<256x256xf32>
      %25 = arith.mulf %14, %24 : vector<256x256xf32>
      %26 = arith.mulf %22, %25 : vector<256x256xf32>
      %c0_9 = arith.constant 0 : index
      %c0_10 = arith.constant 0 : index
      %c0_11 = arith.constant 0 : index
      %27 = vector.load %arg5[%c0_9, %c0_10, %c0_11] : memref<1x256x256xf32, #tpu.memory_space<vmem>>, vector<1x256x256xf32>
      %28 = vector.shape_cast %27 : vector<1x256x256xf32> to vector<256x256xf32>
      %29 = vector.shape_cast %26 : vector<256x256xf32> to vector<1x256x256xf32>
      tpu.vector_store %arg5[%c0_9, %c0_10, %c0_11], %29 {strides = array<i32>} : memref<1x256x256xf32, #tpu.memory_space<vmem>>, vector<1x256x256xf32>,
    } else {
    }
    return
  }
  func.func @transform_0(%arg0: i32, %arg1: i32, %arg2: i32) -> (i32, i32, i32) {
    %c1_i32 = arith.constant 1 : i32
    %0 = arith.subi %c1_i32, %arg1 : i32
    %1 = arith.muli %arg2, %0 : i32
    %c0_i32 = arith.constant 0 : i32
    %c0_i32_0 = arith.constant 0 : i32
    return %arg0, %1, %c0_i32 : i32, i32, i32
  }
  func.func @transform_1(%arg0: i32, %arg1: i32, %arg2: i32) -> (i32, i32, i32) {
    %c0_i32 = arith.constant 0 : i32
    %c0_i32_0 = arith.constant 0 : i32
    %c0_i32_1 = arith.constant 0 : i32
    return %arg0, %c0_i32, %c0_i32_0 : i32, i32, i32
  }
  func.func @transform_2(%arg0: i32, %arg1: i32, %arg2: i32) -> (i32, i32, i32) {
    %0 = arith.muli %arg2, %arg1 : i32
    %c0_i32 = arith.constant 0 : i32
    %c0_i32_0 = arith.constant 0 : i32
    return %arg0, %0, %c0_i32 : i32, i32, i32
  }
}

</mosaic_0001>

<llo_original>
// kernel: tpu_custom_call.1
$region0: #{tpu_custom_call.1}
  #allocation0 [shape = 'u32[]', space=smem, size = 0x4, offset = 0x4, fixed_abs, tag = 'smem constant byte address 0x4 - core index']
  #allocation1 [shape = 'u32[72,128]{1,0:T(1,128)}', space=vmem, size = 0x9000, scoped, tag = 'internal scratch']
  #allocation2 [shape = 'f32[1,256]{1,0:T(1,128)}', space=vmem, size = 0x400, scoped, tag = 'scratch operand']
  #allocation3 [shape = 'f32[256,256]{1,0:T(8,128)}', space=vmem, size = 0x40000, scoped, tag = 'scratch operand']
  %s0 = inlined_call_operand.vmem [shape: f32[2,256,4], index: 0, kind: input, shape index: {}]
  %s1 = inlined_call_operand.vmem [shape: f32[2,4,256], index: 1, kind: input, shape index: {}]
  %s2 = inlined_call_operand.hbm [shape: f32[2,256,256], index: 2, kind: output, shape index: {}]
  %s3 = sld [smem:[#allocation0]]
  $region57: #{tpu_custom_call.1} parent=0
    _
  %s5 = ssub.s32 1, %s3
  %s6 = scalar_select 0, %s5, %s3
  $region1: #{tpu_custom_call.1} parent=0
    #allocation4 [shape = 'u8[524288]{0}', space=vmem, size = 0x80000, scoped, tag = 'output window, operand 0']
    #allocation5 [shape = 's32[2]{0}', space=sflag, size = 0x8, scoped, tag = 'scoped memory for tpu_custom_call.1']
    %7 = vsyncpa [#allocation5], 0
    %s8 = scalar_lea.sflag [#allocation5], 1
    %9 = vsyncpa %s8, 0
    loop: start=0, step=1, limit=6
    $region2: #{tpu_custom_call.1} parent=1 // loop_pre_header
      _
    $region3: #{tpu_custom_call.1} parent=1 // loop_header
      %s11 = sphi 0, %s15
      %p12 = scmp.ge.s32.totalorder %s11, 6
      %s18 = sphi 0, %s37
      %s19 = sphi 0, %s33
      %s20 = sphi 0, %s29
      %s21 = sphi 0, %s18
      %s22 = sphi 0, %s19
      %s23 = sphi 0, %s20
      %s24 = sphi 0, %s21
      %s25 = sphi 0, %s22
      %s26 = sphi 0, %s23
      %s46 = sphi 0, %s48
      %s49 = sphi 0, %s46
      %s50 = sphi 0, %s49
      %s66 = sphi 0, %s50
      %s72 = sphi 0, %s74
      %s75 = sphi 0, %s72
      %s76 = sphi 0, %s75
      %s92 = sphi 0, %s76
      %s102 = sphi 0, %s104
      %s105 = sphi 0, %s102
      %s106 = sphi 0, %s105
      %s122 = sphi 0, %s106
    $region4: #{tpu_custom_call.1} parent=1 // loop_header_branch
      %14 = sbr.rel (%p12) target = $region8
    $region5: #{tpu_custom_call.1} parent=1 // loop_body
      %s16 = ssub.s32 %s11, 1
      %s17 = ssub.s32 %s11, 2
      %s27 = sadd.s32 1, %s20
      %p28 = scmp.ge.s32.totalorder %s27, 1
      %s29 = scalar_select %p28, 0, %s27
      %s30 = sadd.s32 1, %s19
      %s31 = scalar_select %p28, %s30, %s19
      %p32 = scmp.ge.s32.totalorder %s31, 2
      %s33 = scalar_select %p32, 0, %s31
      %s34 = sadd.s32 1, %s18
      %s35 = scalar_select %p32, %s34, %s18
      %p36 = scmp.ge.s32.totalorder %s35, 2
      %s37 = scalar_select %p36, 0, %s35
      %s38 = ssub.s32 1, %s19
      %s39 = smul.u32 %s20, %s38
      %s40 = ssub.s32 1, %s33
      %s41 = smul.u32 %s29, %s40
      %s42 = ssub.s32 %s18, %s37
      %s43 = ssub.s32 %s39, %s41
      %s44 = sor.u32 %s42, %s43
      %p45 = scmp.eq.s32.totalorder %s44, 0
      %s47 = sadd.s32 %s46, 1
      %s48 = scalar_select %p45, %s46, %s47
      %p51 = pneg %p45
      %p52 = scmp.eq.s32.totalorder %s11, 3
      %p53 = por %p51, %p52
      %p54 = scmp.ne.s32.totalorder %s46, %s49
      %p55 = scmp.eq.s32.totalorder %s11, 0
      %p56 = por %p54, %p55
      %p57 = scmp.ne.s32.totalorder %s46, %s49
      %p58 = scmp.eq.s32.totalorder %s16, 3
      %p59 = por %p57, %p58
      %p60 = scmp.ne.s32.totalorder %s49, %s50
      %p61 = scmp.eq.s32.totalorder %s16, 0
      %p62 = por %p60, %p61
      %p63 = scmp.ne.s32.totalorder %s49, %s50
      %p64 = scmp.eq.s32.totalorder %s17, 3
      %p65 = por %p63, %p64
      %p67 = scmp.ne.s32.totalorder %s50, %s66
      %p68 = scmp.eq.s32.totalorder %s17, 0
      %p69 = por %p67, %p68
      %s70 = ssub.s32 %s18, %s37
      %p71 = scmp.eq.s32.totalorder %s70, 0
      %s73 = sadd.s32 %s72, 1
      %s74 = scalar_select %p71, %s72, %s73
      %p77 = pneg %p71
      %p78 = scmp.eq.s32.totalorder %s11, 3
      %p79 = por %p77, %p78
      %p80 = scmp.ne.s32.totalorder %s72, %s75
      %p81 = scmp.eq.s32.totalorder %s11, 0
      %p82 = por %p80, %p81
      %p83 = scmp.ne.s32.totalorder %s72, %s75
      %p84 = scmp.eq.s32.totalorder %s16, 3
      %p85 = por %p83, %p84
      %p86 = scmp.ne.s32.totalorder %s75, %s76
      %p87 = scmp.eq.s32.totalorder %s16, 0
      %p88 = por %p86, %p87
      %p89 = scmp.ne.s32.totalorder %s75, %s76
      %p90 = scmp.eq.s32.totalorder %s17, 3
      %p91 = por %p89, %p90
      %p93 = scmp.ne.s32.totalorder %s76, %s92
      %p94 = scmp.eq.s32.totalorder %s17, 0
      %p95 = por %p93, %p94
      %s96 = smul.u32 %s20, %s19
      %s97 = smul.u32 %s29, %s33
      %s98 = ssub.s32 %s18, %s37
      %s99 = ssub.s32 %s96, %s97
      %s100 = sor.u32 %s98, %s99
      %p101 = scmp.eq.s32.totalorder %s100, 0
      %s103 = sadd.s32 %s102, 1
      %s104 = scalar_select %p101, %s102, %s103
      %p107 = pneg %p101
      %p108 = scmp.eq.s32.totalorder %s11, 3
      %p109 = por %p107, %p108
      %p110 = scmp.ne.s32.totalorder %s102, %s105
      %p111 = scmp.eq.s32.totalorder %s11, 0
      %p112 = por %p110, %p111
      %p113 = scmp.ne.s32.totalorder %s102, %s105
      %p114 = scmp.eq.s32.totalorder %s16, 3
      %p115 = por %p113, %p114
      %p116 = scmp.ne.s32.totalorder %s105, %s106
      %p117 = scmp.eq.s32.totalorder %s16, 0
      %p118 = por %p116, %p117
      %p119 = scmp.ne.s32.totalorder %s105, %s106
      %p120 = scmp.eq.s32.totalorder %s17, 3
      %p121 = por %p119, %p120
      %p123 = scmp.ne.s32.totalorder %s106, %s122
      %p124 = scmp.eq.s32.totalorder %s17, 0
      %p125 = por %p123, %p124
      %p126 = scmp.le.s32.totalorder 1, %s11
      %p127 = scmp.lt.s32.totalorder %s11, 5
      %p128 = pnand %p126, %p127
      %p129 = pneg %p128
      // Predicated region
      $region9: #{tpu_custom_call.1} parent=5 // pred_check
        _
      $region10: #{tpu_custom_call.1} parent=5 // pred_check_branch
        %131 = sbr.rel (%p128) target = $region12
      $region11: #{tpu_custom_call.1} parent=5 // pred_region
        %s132 = ssub.s32 %s11, 1
      $region12: #{tpu_custom_call.1} parent=5 // pred_fallthru
        _
      %p133 = scmp.lt.s32.totalorder %s11, 4
      // Predicated region
      $region13: #{tpu_custom_call.1} parent=5 // pred_check
        %p134 = pneg %p133
      $region14: #{tpu_custom_call.1} parent=5 // pred_check_branch
        %136 = sbr.rel (%p134) target = $region16
      $region15: #{tpu_custom_call.1} parent=5 // pred_region
        // Predicated region
        $region17: #{tpu_custom_call.1} parent=15 // pred_check
          %p137 = pneg %p56
        $region18: #{tpu_custom_call.1} parent=15 // pred_check_branch
          %139 = sbr.rel (%p137) target = $region20
        $region19: #{tpu_custom_call.1} parent=15 // pred_region
          %s140 = ssub.s32 1, %s19
          %s141 = smul.u32 %s20, %s140
          %s142 = smul.u32 32, %s141
          %p143 = scmp.lt.s32.totalorder %s18, 1
          %s144 = scalar_select %p143, %s18, 1
          %p145 = scmp.lt.s32.totalorder %s142, 31
          %s146 = scalar_select %p145, %s142, 31
          %s147 = smul.addr %s144, 32
          %s148 = sadd.s32 %s146, %s147
          %s149 = smul.addr %s148, 8
          %s150 = scalar_lea.vmem %s0, %s149
          %s151 = ssub.s32 1, %s19
          %s152 = smul.u32 %s20, %s151
          %s153 = smul.u32 32, %s152
        $region20: #{tpu_custom_call.1} parent=15 // pred_fallthru
          _
        // Predicated region
        $region21: #{tpu_custom_call.1} parent=15 // pred_check
          %p154 = pneg %p82
        $region22: #{tpu_custom_call.1} parent=15 // pred_check_branch
          %156 = sbr.rel (%p154) target = $region24
        $region23: #{tpu_custom_call.1} parent=15 // pred_region
          %p157 = scmp.lt.s32.totalorder %s18, 1
          %s158 = scalar_select %p157, %s18, 1
          %s159 = smul.addr %s158, 2
          %s160 = smul.addr %s159, 4
          %s161 = scalar_lea.vmem %s1, %s160
        $region24: #{tpu_custom_call.1} parent=15 // pred_fallthru
          _
      $region16: #{tpu_custom_call.1} parent=5 // pred_fallthru
        _
      %p162 = scmp.le.s32.totalorder 1, %s11
      %p163 = scmp.lt.s32.totalorder %s11, 5
      %p164 = pnand %p162, %p163
      %p165 = pneg %p164
      // Predicated region
      $region25: #{tpu_custom_call.1} parent=5 // pred_check
        _
      $region26: #{tpu_custom_call.1} parent=5 // pred_check_branch
        %167 = sbr.rel (%p164) target = $region28
      $region27: #{tpu_custom_call.1} parent=5 // pred_region
        %s168 = ssub.s32 %s11, 1
        %s169 = ssub.s32 1, %s22
        %s170 = smul.u32 %s23, %s169
        %s171 = smul.u32 32, %s170
        %p172 = scmp.lt.s32.totalorder %s21, 1
        %s173 = scalar_select %p172, %s21, 1
        %p174 = scmp.lt.s32.totalorder %s171, 31
        %s175 = scalar_select %p174, %s171, 31
        %s176 = smul.addr %s173, 32
        %s177 = sadd.s32 %s175, %s176
        %s178 = smul.addr %s177, 8
        %s179 = scalar_lea.vmem %s0, %s178
        %p180 = pneg %p62
        %p181 = pneg %p59
        %p182 = scmp.lt.s32.totalorder %s21, 1
        %s183 = scalar_select %p182, %s21, 1
        %s184 = smul.addr %s183, 2
        %s185 = smul.addr %s184, 4
        %s186 = scalar_lea.vmem %s1, %s185
        %p187 = pneg %p88
        %p188 = pneg %p85
        %p189 = pneg %p118
        %p190 = pneg %p115
        %s191 = sand.u32 %s105, 1
        %s192 = scalar_lea.sflag [#allocation5], %s191
        %s193 = sand.u32 %s105, 1
        %s194 = smul.addr %s193, 512
        %s195 = scalar_lea.vmem [#allocation4], %s194
        %s196 = ssub.s32 1, %s22
        %s197 = smul.u32 %s23, %s196
        %s198 = smul.u32 32, %s197
        %p199 = scmp.lt.s32.totalorder %s21, 1
        %s200 = scalar_select %p199, %s21, 1
        %p201 = scmp.lt.s32.totalorder %s198, 31
        %s202 = scalar_select %p201, %s198, 31
        %s203 = smul.addr %s200, 32
        %s204 = sadd.s32 %s202, %s203
        %s205 = smul.addr %s204, 8
        %s206 = scalar_lea.vmem %s0, %s205
        %s207 = ssub.s32 1, %s22
        %s208 = smul.u32 %s23, %s207
        %s209 = smul.u32 32, %s208
        %p210 = scmp.lt.s32.totalorder %s21, 1
        %s211 = scalar_select %p210, %s21, 1
        %s212 = smul.addr %s211, 2
        %s213 = smul.addr %s212, 4
        %s214 = scalar_lea.vmem %s1, %s213
        %s215 = smul.u32 %s23, %s22
        %s216 = smul.u32 32, %s215
        %p217 = scmp.eq.s32.totalorder %s22, 0
        %p218 = scmp.eq.s32.totalorder %s23, 0
        %p219 = pnand %p217, %p218
        %p220 = pneg %p219
        // Predicated region
        $region29: #{tpu_custom_call.1} parent=27 // pred_check
          _
        $region30: #{tpu_custom_call.1} parent=27 // pred_check_branch
          %222 = sbr.rel (%p219) target = $region32
        $region31: #{tpu_custom_call.1} parent=27 // pred_region
          %v223 = vlaneseq
          %vm224 = vcmp.ge.s32.totalorder %v223, 0
          %vm225 = vcmp.lt.s32.totalorder %v223, 256
          %vm226 = vmand %vm224, %vm225
          %227 = vst.msk [vmem:[#allocation2] sm:$0x3] %vm226, 0.0
        $region32: #{tpu_custom_call.1} parent=27 // pred_fallthru
          _
        // Predicated region
        $region33: #{tpu_custom_call.1} parent=27 // pred_check
          %p228 = pneg %p217
        $region34: #{tpu_custom_call.1} parent=27 // pred_check_branch
          %230 = sbr.rel (%p228) target = $region36
        $region35: #{tpu_custom_call.1} parent=27 // pred_region
          %v231 = vld [vmem:[%s206] sm:$0xff]
          %v232 = vld [vmem:[%s206 + $0x8] sm:$0xff]
          %v233 = vld [vmem:[%s206 + $0x10] sm:$0xff]
          %v234 = vld [vmem:[%s206 + $0x18] sm:$0xff]
          %v235 = vld [vmem:[%s206 + $0x20] sm:$0xff]
          %v236 = vld [vmem:[%s206 + $0x28] sm:$0xff]
          %v237 = vld [vmem:[%s206 + $0x30] sm:$0xff]
          %v238 = vld [vmem:[%s206 + $0x38] sm:$0xff]
          %v239 = vld [vmem:[%s206 + $0x40] sm:$0xff]
          %v240 = vld [vmem:[%s206 + $0x48] sm:$0xff]
          %v241 = vld [vmem:[%s206 + $0x50] sm:$0xff]
          %v242 = vld [vmem:[%s206 + $0x58] sm:$0xff]
          %v243 = vld [vmem:[%s206 + $0x60] sm:$0xff]
          %v244 = vld [vmem:[%s206 + $0x68] sm:$0xff]
          %v245 = vld [vmem:[%s206 + $0x70] sm:$0xff]
          %v246 = vld [vmem:[%s206 + $0x78] sm:$0xff]
          %v247 = vld [vmem:[%s206 + $0x80] sm:$0xff]
          %v248 = vld [vmem:[%s206 + $0x88] sm:$0xff]
          %v249 = vld [vmem:[%s206 + $0x90] sm:$0xff]
          %v250 = vld [vmem:[%s206 + $0x98] sm:$0xff]
          %v251 = vld [vmem:[%s206 + $0xa0] sm:$0xff]
          %v252 = vld [vmem:[%s206 + $0xa8] sm:$0xff]
          %v253 = vld [vmem:[%s206 + $0xb0] sm:$0xff]
          %v254 = vld [vmem:[%s206 + $0xb8] sm:$0xff]
          %v255 = vld [vmem:[%s206 + $0xc0] sm:$0xff]
          %v256 = vld [vmem:[%s206 + $0xc8] sm:$0xff]
          %v257 = vld [vmem:[%s206 + $0xd0] sm:$0xff]
          %v258 = vld [vmem:[%s206 + $0xd8] sm:$0xff]
          %v259 = vld [vmem:[%s206 + $0xe0] sm:$0xff]
          %v260 = vld [vmem:[%s206 + $0xe8] sm:$0xff]
          %v261 = vld [vmem:[%s206 + $0xf0] sm:$0xff]
          %v262 = vld [vmem:[%s206 + $0xf8] sm:$0xff]
          %v263 = vmul.f32 %v231, %v231
          %v264 = vmul.f32 %v232, %v232
          %v265 = vmul.f32 %v233, %v233
          %v266 = vmul.f32 %v234, %v234
          %v267 = vmul.f32 %v235, %v235
          %v268 = vmul.f32 %v236, %v236
          %v269 = vmul.f32 %v237, %v237
          %v270 = vmul.f32 %v238, %v238
          %v271 = vmul.f32 %v239, %v239
          %v272 = vmul.f32 %v240, %v240
          %v273 = vmul.f32 %v241, %v241
          %v274 = vmul.f32 %v242, %v242
          %v275 = vmul.f32 %v243, %v243
          %v276 = vmul.f32 %v244, %v244
          %v277 = vmul.f32 %v245, %v245
          %v278 = vmul.f32 %v246, %v246
          %v279 = vmul.f32 %v247, %v247
          %v280 = vmul.f32 %v248, %v248
          %v281 = vmul.f32 %v249, %v249
          %v282 = vmul.f32 %v250, %v250
          %v283 = vmul.f32 %v251, %v251
          %v284 = vmul.f32 %v252, %v252
          %v285 = vmul.f32 %v253, %v253
          %v286 = vmul.f32 %v254, %v254
          %v287 = vmul.f32 %v255, %v255
          %v288 = vmul.f32 %v256, %v256
          %v289 = vmul.f32 %v257, %v257
          %v290 = vmul.f32 %v258, %v258
          %v291 = vmul.f32 %v259, %v259
          %v292 = vmul.f32 %v260, %v260
          %v293 = vmul.f32 %v261, %v261
          %v294 = vmul.f32 %v262, %v262
          %vm295 = vcmask 31744
          %v296 = vsel %vm295, %v263, 0.0
          %297 = vadd.xlane.f32.xlu0 %v296
          %v298 = vpop.xlane.xlu0 %297
          %v299 = vsel %vm295, %v264, 0.0
          %300 = vadd.xlane.f32.xlu0 %v299
          %v301 = vpop.xlane.xlu0 %300
          %v302 = vsel %vm295, %v265, 0.0
          %303 = vadd.xlane.f32.xlu0 %v302
          %v304 = vpop.xlane.xlu0 %303
          %v305 = vsel %vm295, %v266, 0.0
          %306 = vadd.xlane.f32.xlu0 %v305
          %v307 = vpop.xlane.xlu0 %306
          %v308 = vsel %vm295, %v267, 0.0
          %309 = vadd.xlane.f32.xlu0 %v308
          %v310 = vpop.xlane.xlu0 %309
          %v311 = vsel %vm295, %v268, 0.0
          %312 = vadd.xlane.f32.xlu0 %v311
          %v313 = vpop.xlane.xlu0 %312
          %v314 = vsel %vm295, %v269, 0.0
          %315 = vadd.xlane.f32.xlu0 %v314
          %v316 = vpop.xlane.xlu0 %315
          %v317 = vsel %vm295, %v270, 0.0
          %318 = vadd.xlane.f32.xlu0 %v317
          %v319 = vpop.xlane.xlu0 %318
          %v320 = vsel %vm295, %v271, 0.0
          %321 = vadd.xlane.f32.xlu0 %v320
          %v322 = vpop.xlane.xlu0 %321
          %v323 = vsel %vm295, %v272, 0.0
          %324 = vadd.xlane.f32.xlu0 %v323
          %v325 = vpop.xlane.xlu0 %324
          %v326 = vsel %vm295, %v273, 0.0
          %327 = vadd.xlane.f32.xlu0 %v326
          %v328 = vpop.xlane.xlu0 %327
          %v329 = vsel %vm295, %v274, 0.0
          %330 = vadd.xlane.f32.xlu0 %v329
          %v331 = vpop.xlane.xlu0 %330
          %v332 = vsel %vm295, %v275, 0.0
          %333 = vadd.xlane.f32.xlu0 %v332
          %v334 = vpop.xlane.xlu0 %333
          %v335 = vsel %vm295, %v276, 0.0
          %336 = vadd.xlane.f32.xlu0 %v335
          %v337 = vpop.xlane.xlu0 %336
          %v338 = vsel %vm295, %v277, 0.0
          %339 = vadd.xlane.f32.xlu0 %v338
          %v340 = vpop.xlane.xlu0 %339
          %v341 = vsel %vm295, %v278, 0.0
          %342 = vadd.xlane.f32.xlu0 %v341
          %v343 = vpop.xlane.xlu0 %342
          %v344 = vsel %vm295, %v279, 0.0
          %345 = vadd.xlane.f32.xlu0 %v344
          %v346 = vpop.xlane.xlu0 %345
          %v347 = vsel %vm295, %v280, 0.0
          %348 = vadd.xlane.f32.xlu0 %v347
          %v349 = vpop.xlane.xlu0 %348
          %v350 = vsel %vm295, %v281, 0.0
          %351 = vadd.xlane.f32.xlu0 %v350
          %v352 = vpop.xlane.xlu0 %351
          %v353 = vsel %vm295, %v282, 0.0
          %354 = vadd.xlane.f32.xlu0 %v353
          %v355 = vpop.xlane.xlu0 %354
          %v356 = vsel %vm295, %v283, 0.0
          %357 = vadd.xlane.f32.xlu0 %v356
          %v358 = vpop.xlane.xlu0 %357
          %v359 = vsel %vm295, %v284, 0.0
          %360 = vadd.xlane.f32.xlu0 %v359
          %v361 = vpop.xlane.xlu0 %360
          %v362 = vsel %vm295, %v285, 0.0
          %363 = vadd.xlane.f32.xlu0 %v362
          %v364 = vpop.xlane.xlu0 %363
          %v365 = vsel %vm295, %v286, 0.0
          %366 = vadd.xlane.f32.xlu0 %v365
          %v367 = vpop.xlane.xlu0 %366
          %v368 = vsel %vm295, %v287, 0.0
          %369 = vadd.xlane.f32.xlu0 %v368
          %v370 = vpop.xlane.xlu0 %369
          %v371 = vsel %vm295, %v288, 0.0
          %372 = vadd.xlane.f32.xlu0 %v371
          %v373 = vpop.xlane.xlu0 %372
          %v374 = vsel %vm295, %v289, 0.0
          %375 = vadd.xlane.f32.xlu0 %v374
          %v376 = vpop.xlane.xlu0 %375
          %v377 = vsel %vm295, %v290, 0.0
          %378 = vadd.xlane.f32.xlu0 %v377
          %v379 = vpop.xlane.xlu0 %378
          %v380 = vsel %vm295, %v291, 0.0
          %381 = vadd.xlane.f32.xlu0 %v380
          %v382 = vpop.xlane.xlu0 %381
          %v383 = vsel %vm295, %v292, 0.0
          %384 = vadd.xlane.f32.xlu0 %v383
          %v385 = vpop.xlane.xlu0 %384
          %v386 = vsel %vm295, %v293, 0.0
          %387 = vadd.xlane.f32.xlu0 %v386
          %v388 = vpop.xlane.xlu0 %387
          %v389 = vsel %vm295, %v294, 0.0
          %390 = vadd.xlane.f32.xlu0 %v389
          %v391 = vpop.xlane.xlu0 %390
          %v392 = vmax.f32 %v298, 1e-24
          %v393 = vmax.f32 %v301, 1e-24
          %v394 = vmax.f32 %v304, 1e-24
          %v395 = vmax.f32 %v307, 1e-24
          %v396 = vmax.f32 %v310, 1e-24
          %v397 = vmax.f32 %v313, 1e-24
          %v398 = vmax.f32 %v316, 1e-24
          %v399 = vmax.f32 %v319, 1e-24
          %v400 = vmax.f32 %v322, 1e-24
          %v401 = vmax.f32 %v325, 1e-24
          %v402 = vmax.f32 %v328, 1e-24
          %v403 = vmax.f32 %v331, 1e-24
          %v404 = vmax.f32 %v334, 1e-24
          %v405 = vmax.f32 %v337, 1e-24
          %v406 = vmax.f32 %v340, 1e-24
          %v407 = vmax.f32 %v343, 1e-24
          %v408 = vmax.f32 %v346, 1e-24
          %v409 = vmax.f32 %v349, 1e-24
          %v410 = vmax.f32 %v352, 1e-24
          %v411 = vmax.f32 %v355, 1e-24
          %v412 = vmax.f32 %v358, 1e-24
          %v413 = vmax.f32 %v361, 1e-24
          %v414 = vmax.f32 %v364, 1e-24
          %v415 = vmax.f32 %v367, 1e-24
          %v416 = vmax.f32 %v370, 1e-24
          %v417 = vmax.f32 %v373, 1e-24
          %v418 = vmax.f32 %v376, 1e-24
          %v419 = vmax.f32 %v379, 1e-24
          %v420 = vmax.f32 %v382, 1e-24
          %v421 = vmax.f32 %v385, 1e-24
          %v422 = vmax.f32 %v388, 1e-24
          %v423 = vmax.f32 %v391, 1e-24
          %v424 = vrsqrt.pop %v392
          %v425 = vmul.f32 %v424, %v392
          %v426 = vmul.f32 %v425, %v424
          %v427 = vmul.f32 0.5, %v426
          %v428 = vsub.f32 1.5, %v427
          %v429 = vmul.f32 %v424, %v428
          %vm430 = vweird.f32 %v392
          %vm431 = vweird.f32 %v424
          %vm432 = vmor %vm430, %vm431
          %v433 = vsel %vm432, %v424, %v429
          %v434 = vrsqrt.pop %v393
          %v435 = vmul.f32 %v434, %v393
          %v436 = vmul.f32 %v435, %v434
          %v437 = vmul.f32 0.5, %v436
          %v438 = vsub.f32 1.5, %v437
          %v439 = vmul.f32 %v434, %v438
          %vm440 = vweird.f32 %v393
          %vm441 = vweird.f32 %v434
          %vm442 = vmor %vm440, %vm441
          %v443 = vsel %vm442, %v434, %v439
          %v444 = vrsqrt.pop %v394
          %v445 = vmul.f32 %v444, %v394
          %v446 = vmul.f32 %v445, %v444
          %v447 = vmul.f32 0.5, %v446
          %v448 = vsub.f32 1.5, %v447
          %v449 = vmul.f32 %v444, %v448
          %vm450 = vweird.f32 %v394
          %vm451 = vweird.f32 %v444
          %vm452 = vmor %vm450, %vm451
          %v453 = vsel %vm452, %v444, %v449
          %v454 = vrsqrt.pop %v395
          %v455 = vmul.f32 %v454, %v395
          %v456 = vmul.f32 %v455, %v454
          %v457 = vmul.f32 0.5, %v456
          %v458 = vsub.f32 1.5, %v457
          %v459 = vmul.f32 %v454, %v458
          %vm460 = vweird.f32 %v395
          %vm461 = vweird.f32 %v454
          %vm462 = vmor %vm460, %vm461
          %v463 = vsel %vm462, %v454, %v459
          %v464 = vrsqrt.pop %v396
          %v465 = vmul.f32 %v464, %v396
          %v466 = vmul.f32 %v465, %v464
          %v467 = vmul.f32 0.5, %v466
          %v468 = vsub.f32 1.5, %v467
          %v469 = vmul.f32 %v464, %v468
          %vm470 = vweird.f32 %v396
          %vm471 = vweird.f32 %v464
          %vm472 = vmor %vm470, %vm471
          %v473 = vsel %vm472, %v464, %v469
          %v474 = vrsqrt.pop %v397
          %v475 = vmul.f32 %v474, %v397
          %v476 = vmul.f32 %v475, %v474
          %v477 = vmul.f32 0.5, %v476
          %v478 = vsub.f32 1.5, %v477
          %v479 = vmul.f32 %v474, %v478
          %vm480 = vweird.f32 %v397
          %vm481 = vweird.f32 %v474
          %vm482 = vmor %vm480, %vm481
          %v483 = vsel %vm482, %v474, %v479
          %v484 = vrsqrt.pop %v398
          %v485 = vmul.f32 %v484, %v398
          %v486 = vmul.f32 %v485, %v484
          %v487 = vmul.f32 0.5, %v486
          %v488 = vsub.f32 1.5, %v487
          %v489 = vmul.f32 %v484, %v488
          %vm490 = vweird.f32 %v398
          %vm491 = vweird.f32 %v484
          %vm492 = vmor %vm490, %vm491
          %v493 = vsel %vm492, %v484, %v489
          %v494 = vrsqrt.pop %v399
          %v495 = vmul.f32 %v494, %v399
          %v496 = vmul.f32 %v495, %v494
          %v497 = vmul.f32 0.5, %v496
          %v498 = vsub.f32 1.5, %v497
          %v499 = vmul.f32 %v494, %v498
          %vm500 = vweird.f32 %v399
          %vm501 = vweird.f32 %v494
          %vm502 = vmor %vm500, %vm501
          %v503 = vsel %vm502, %v494, %v499
          %v504 = vrsqrt.pop %v400
          %v505 = vmul.f32 %v504, %v400
          %v506 = vmul.f32 %v505, %v504
          %v507 = vmul.f32 0.5, %v506
          %v508 = vsub.f32 1.5, %v507
          %v509 = vmul.f32 %v504, %v508
          %vm510 = vweird.f32 %v400
          %vm511 = vweird.f32 %v504
          %vm512 = vmor %vm510, %vm511
          %v513 = vsel %vm512, %v504, %v509
          %v514 = vrsqrt.pop %v401
          %v515 = vmul.f32 %v514, %v401
          %v516 = vmul.f32 %v515, %v514
          %v517 = vmul.f32 0.5, %v516
          %v518 = vsub.f32 1.5, %v517
          %v519 = vmul.f32 %v514, %v518
          %vm520 = vweird.f32 %v401
          %vm521 = vweird.f32 %v514
          %vm522 = vmor %vm520, %vm521
          %v523 = vsel %vm522, %v514, %v519
          %v524 = vrsqrt.pop %v402
          %v525 = vmul.f32 %v524, %v402
          %v526 = vmul.f32 %v525, %v524
          %v527 = vmul.f32 0.5, %v526
          %v528 = vsub.f32 1.5, %v527
          %v529 = vmul.f32 %v524, %v528
          %vm530 = vweird.f32 %v402
          %vm531 = vweird.f32 %v524
          %vm532 = vmor %vm530, %vm531
          %v533 = vsel %vm532, %v524, %v529
          %v534 = vrsqrt.pop %v403
          %v535 = vmul.f32 %v534, %v403
          %v536 = vmul.f32 %v535, %v534
          %v537 = vmul.f32 0.5, %v536
          %v538 = vsub.f32 1.5, %v537
          %v539 = vmul.f32 %v534, %v538
          %vm540 = vweird.f32 %v403
          %vm541 = vweird.f32 %v534
          %vm542 = vmor %vm540, %vm541
          %v543 = vsel %vm542, %v534, %v539
          %v544 = vrsqrt.pop %v404
          %v545 = vmul.f32 %v544, %v404
          %v546 = vmul.f32 %v545, %v544
          %v547 = vmul.f32 0.5, %v546
          %v548 = vsub.f32 1.5, %v547
          %v549 = vmul.f32 %v544, %v548
          %vm550 = vweird.f32 %v404
          %vm551 = vweird.f32 %v544
          %vm552 = vmor %vm550, %vm551
          %v553 = vsel %vm552, %v544, %v549
          %v554 = vrsqrt.pop %v405
          %v555 = vmul.f32 %v554, %v405
          %v556 = vmul.f32 %v555, %v554
          %v557 = vmul.f32 0.5, %v556
          %v558 = vsub.f32 1.5, %v557
          %v559 = vmul.f32 %v554, %v558
          %vm560 = vweird.f32 %v405
          %vm561 = vweird.f32 %v554
          %vm562 = vmor %vm560, %vm561
          %v563 = vsel %vm562, %v554, %v559
          %v564 = vrsqrt.pop %v406
          %v565 = vmul.f32 %v564, %v406
          %v566 = vmul.f32 %v565, %v564
          %v567 = vmul.f32 0.5, %v566
          %v568 = vsub.f32 1.5, %v567
          %v569 = vmul.f32 %v564, %v568
          %vm570 = vweird.f32 %v406
          %vm571 = vweird.f32 %v564
          %vm572 = vmor %vm570, %vm571
          %v573 = vsel %vm572, %v564, %v569
          %v574 = vrsqrt.pop %v407
          %v575 = vmul.f32 %v574, %v407
          %v576 = vmul.f32 %v575, %v574
          %v577 = vmul.f32 0.5, %v576
          %v578 = vsub.f32 1.5, %v577
          %v579 = vmul.f32 %v574, %v578
          %vm580 = vweird.f32 %v407
          %vm581 = vweird.f32 %v574
          %vm582 = vmor %vm580, %vm581
          %v583 = vsel %vm582, %v574, %v579
          %v584 = vrsqrt.pop %v408
          %v585 = vmul.f32 %v584, %v408
          %v586 = vmul.f32 %v585, %v584
          %v587 = vmul.f32 0.5, %v586
          %v588 = vsub.f32 1.5, %v587
          %v589 = vmul.f32 %v584, %v588
          %vm590 = vweird.f32 %v408
          %vm591 = vweird.f32 %v584
          %vm592 = vmor %vm590, %vm591
          %v593 = vsel %vm592, %v584, %v589
          %v594 = vrsqrt.pop %v409
          %v595 = vmul.f32 %v594, %v409
          %v596 = vmul.f32 %v595, %v594
          %v597 = vmul.f32 0.5, %v596
          %v598 = vsub.f32 1.5, %v597
          %v599 = vmul.f32 %v594, %v598
          %vm600 = vweird.f32 %v409
          %vm601 = vweird.f32 %v594
          %vm602 = vmor %vm600, %vm601
          %v603 = vsel %vm602, %v594, %v599
          %v604 = vrsqrt.pop %v410
          %v605 = vmul.f32 %v604, %v410
          %v606 = vmul.f32 %v605, %v604
          %v607 = vmul.f32 0.5, %v606
          %v608 = vsub.f32 1.5, %v607
          %v609 = vmul.f32 %v604, %v608
          %vm610 = vweird.f32 %v410
          %vm611 = vweird.f32 %v604
          %vm612 = vmor %vm610, %vm611
          %v613 = vsel %vm612, %v604, %v609
          %v614 = vrsqrt.pop %v411
          %v615 = vmul.f32 %v614, %v411
          %v616 = vmul.f32 %v615, %v614
          %v617 = vmul.f32 0.5, %v616
          %v618 = vsub.f32 1.5, %v617
          %v619 = vmul.f32 %v614, %v618
          %vm620 = vweird.f32 %v411
          %vm621 = vweird.f32 %v614
          %vm622 = vmor %vm620, %vm621
          %v623 = vsel %vm622, %v614, %v619
          %v624 = vrsqrt.pop %v412
          %v625 = vmul.f32 %v624, %v412
          %v626 = vmul.f32 %v625, %v624
          %v627 = vmul.f32 0.5, %v626
          %v628 = vsub.f32 1.5, %v627
          %v629 = vmul.f32 %v624, %v628
          %vm630 = vweird.f32 %v412
          %vm631 = vweird.f32 %v624
          %vm632 = vmor %vm630, %vm631
          %v633 = vsel %vm632, %v624, %v629
          %v634 = vrsqrt.pop %v413
          %v635 = vmul.f32 %v634, %v413
          %v636 = vmul.f32 %v635, %v634
          %v637 = vmul.f32 0.5, %v636
          %v638 = vsub.f32 1.5, %v637
          %v639 = vmul.f32 %v634, %v638
          %vm640 = vweird.f32 %v413
          %vm641 = vweird.f32 %v634
          %vm642 = vmor %vm640, %vm641
          %v643 = vsel %vm642, %v634, %v639
          %v644 = vrsqrt.pop %v414
          %v645 = vmul.f32 %v644, %v414
          %v646 = vmul.f32 %v645, %v644
          %v647 = vmul.f32 0.5, %v646
          %v648 = vsub.f32 1.5, %v647
          %v649 = vmul.f32 %v644, %v648
          %vm650 = vweird.f32 %v414
          %vm651 = vweird.f32 %v644
          %vm652 = vmor %vm650, %vm651
          %v653 = vsel %vm652, %v644, %v649
          %v654 = vrsqrt.pop %v415
          %v655 = vmul.f32 %v654, %v415
          %v656 = vmul.f32 %v655, %v654
          %v657 = vmul.f32 0.5, %v656
          %v658 = vsub.f32 1.5, %v657
          %v659 = vmul.f32 %v654, %v658
          %vm660 = vweird.f32 %v415
          %vm661 = vweird.f32 %v654
          %vm662 = vmor %vm660, %vm661
          %v663 = vsel %vm662, %v654, %v659
          %v664 = vrsqrt.pop %v416
          %v665 = vmul.f32 %v664, %v416
          %v666 = vmul.f32 %v665, %v664
          %v667 = vmul.f32 0.5, %v666
          %v668 = vsub.f32 1.5, %v667
          %v669 = vmul.f32 %v664, %v668
          %vm670 = vweird.f32 %v416
          %vm671 = vweird.f32 %v664
          %vm672 = vmor %vm670, %vm671
          %v673 = vsel %vm672, %v664, %v669
          %v674 = vrsqrt.pop %v417
          %v675 = vmul.f32 %v674, %v417
          %v676 = vmul.f32 %v675, %v674
          %v677 = vmul.f32 0.5, %v676
          %v678 = vsub.f32 1.5, %v677
          %v679 = vmul.f32 %v674, %v678
          %vm680 = vweird.f32 %v417
          %vm681 = vweird.f32 %v674
          %vm682 = vmor %vm680, %vm681
          %v683 = vsel %vm682, %v674, %v679
          %v684 = vrsqrt.pop %v418
          %v685 = vmul.f32 %v684, %v418
          %v686 = vmul.f32 %v685, %v684
          %v687 = vmul.f32 0.5, %v686
          %v688 = vsub.f32 1.5, %v687
          %v689 = vmul.f32 %v684, %v688
          %vm690 = vweird.f32 %v418
          %vm691 = vweird.f32 %v684
          %vm692 = vmor %vm690, %vm691
          %v693 = vsel %vm692, %v684, %v689
          %v694 = vrsqrt.pop %v419
          %v695 = vmul.f32 %v694, %v419
          %v696 = vmul.f32 %v695, %v694
          %v697 = vmul.f32 0.5, %v696
          %v698 = vsub.f32 1.5, %v697
          %v699 = vmul.f32 %v694, %v698
          %vm700 = vweird.f32 %v419
          %vm701 = vweird.f32 %v694
          %vm702 = vmor %vm700, %vm701
          %v703 = vsel %vm702, %v694, %v699
          %v704 = vrsqrt.pop %v420
          %v705 = vmul.f32 %v704, %v420
          %v706 = vmul.f32 %v705, %v704
          %v707 = vmul.f32 0.5, %v706
          %v708 = vsub.f32 1.5, %v707
          %v709 = vmul.f32 %v704, %v708
          %vm710 = vweird.f32 %v420
          %vm711 = vweird.f32 %v704
          %vm712 = vmor %vm710, %vm711
          %v713 = vsel %vm712, %v704, %v709
          %v714 = vrsqrt.pop %v421
          %v715 = vmul.f32 %v714, %v421
          %v716 = vmul.f32 %v715, %v714
          %v717 = vmul.f32 0.5, %v716
          %v718 = vsub.f32 1.5, %v717
          %v719 = vmul.f32 %v714, %v718
          %vm720 = vweird.f32 %v421
          %vm721 = vweird.f32 %v714
          %vm722 = vmor %vm720, %vm721
          %v723 = vsel %vm722, %v714, %v719
          %v724 = vrsqrt.pop %v422
          %v725 = vmul.f32 %v724, %v422
          %v726 = vmul.f32 %v725, %v724
          %v727 = vmul.f32 0.5, %v726
          %v728 = vsub.f32 1.5, %v727
          %v729 = vmul.f32 %v724, %v728
          %vm730 = vweird.f32 %v422
          %vm731 = vweird.f32 %v724
          %vm732 = vmor %vm730, %vm731
          %v733 = vsel %vm732, %v724, %v729
          %v734 = vrsqrt.pop %v423
          %v735 = vmul.f32 %v734, %v423
          %v736 = vmul.f32 %v735, %v734
          %v737 = vmul.f32 0.5, %v736
          %v738 = vsub.f32 1.5, %v737
          %v739 = vmul.f32 %v734, %v738
          %vm740 = vweird.f32 %v423
          %vm741 = vweird.f32 %v734
          %vm742 = vmor %vm740, %vm741
          %v743 = vsel %vm742, %v734, %v739
          %v744 = vmul.f32 %v433, 10.0
          %v745 = vmul.f32 %v443, 10.0
          %v746 = vmul.f32 %v453, 10.0
          %v747 = vmul.f32 %v463, 10.0
          %v748 = vmul.f32 %v473, 10.0
          %v749 = vmul.f32 %v483, 10.0
          %v750 = vmul.f32 %v493, 10.0
          %v751 = vmul.f32 %v503, 10.0
          %v752 = vmul.f32 %v513, 10.0
          %v753 = vmul.f32 %v523, 10.0
          %v754 = vmul.f32 %v533, 10.0
          %v755 = vmul.f32 %v543, 10.0
          %v756 = vmul.f32 %v553, 10.0
          %v757 = vmul.f32 %v563, 10.0
          %v758 = vmul.f32 %v573, 10.0
          %v759 = vmul.f32 %v583, 10.0
          %v760 = vmul.f32 %v593, 10.0
          %v761 = vmul.f32 %v603, 10.0
          %v762 = vmul.f32 %v613, 10.0
          %v763 = vmul.f32 %v623, 10.0
          %v764 = vmul.f32 %v633, 10.0
          %v765 = vmul.f32 %v643, 10.0
          %v766 = vmul.f32 %v653, 10.0
          %v767 = vmul.f32 %v663, 10.0
          %v768 = vmul.f32 %v673, 10.0
          %v769 = vmul.f32 %v683, 10.0
          %v770 = vmul.f32 %v693, 10.0
          %v771 = vmul.f32 %v703, 10.0
          %v772 = vmul.f32 %v713, 10.0
          %v773 = vmul.f32 %v723, 10.0
          %v774 = vmul.f32 %v733, 10.0
          %v775 = vmul.f32 %v743, 10.0
          %v776 = vmul.f32 %v231, %v744
          %v777 = vmul.f32 %v232, %v745
          %v778 = vmul.f32 %v233, %v746
          %v779 = vmul.f32 %v234, %v747
          %v780 = vmul.f32 %v235, %v748
          %v781 = vmul.f32 %v236, %v749
          %v782 = vmul.f32 %v237, %v750
          %v783 = vmul.f32 %v238, %v751
          %v784 = vmul.f32 %v239, %v752
          %v785 = vmul.f32 %v240, %v753
          %v786 = vmul.f32 %v241, %v754
          %v787 = vmul.f32 %v242, %v755
          %v788 = vmul.f32 %v243, %v756
          %v789 = vmul.f32 %v244, %v757
          %v790 = vmul.f32 %v245, %v758
          %v791 = vmul.f32 %v246, %v759
          %v792 = vmul.f32 %v247, %v760
          %v793 = vmul.f32 %v248, %v761
          %v794 = vmul.f32 %v249, %v762
          %v795 = vmul.f32 %v250, %v763
          %v796 = vmul.f32 %v251, %v764
          %v797 = vmul.f32 %v252, %v765
          %v798 = vmul.f32 %v253, %v766
          %v799 = vmul.f32 %v254, %v767
          %v800 = vmul.f32 %v255, %v768
          %v801 = vmul.f32 %v256, %v769
          %v802 = vmul.f32 %v257, %v770
          %v803 = vmul.f32 %v258, %v771
          %v804 = vmul.f32 %v259, %v772
          %v805 = vmul.f32 %v260, %v773
          %v806 = vmul.f32 %v261, %v774
          %v807 = vmul.f32 %v262, %v775
          %v808 = vld [vmem:[%s214] sm:$0xff]
          %810 = vst [vmem:[#allocation1] ss:$2 sm:$0xff] %v808
          %v811 = vld.sshfl [vmem:[#allocation1] sm:$0xff pattern:$0x75316420]
          %v812 = vld.sshfl [vmem:[#allocation1 + $0x8] sm:$0xff pattern:$0x75316420]
          %v814 = vsel %vm295, %v776, 0
          %v817 = vsel %vm295, %v777, 0
          %v820 = vsel %vm295, %v778, 0
          %v823 = vsel %vm295, %v779, 0
          %v826 = vsel %vm295, %v780, 0
          %v829 = vsel %vm295, %v781, 0
          %v832 = vsel %vm295, %v782, 0
          %v835 = vsel %vm295, %v783, 0
          %v838 = vsel %vm295, %v784, 0
          %v841 = vsel %vm295, %v785, 0
          %v844 = vsel %vm295, %v786, 0
          %v847 = vsel %vm295, %v787, 0
          %v850 = vsel %vm295, %v788, 0
          %v853 = vsel %vm295, %v789, 0
          %v856 = vsel %vm295, %v790, 0
          %v859 = vsel %vm295, %v791, 0
          %v862 = vsel %vm295, %v792, 0
          %v865 = vsel %vm295, %v793, 0
          %v868 = vsel %vm295, %v794, 0
          %v871 = vsel %vm295, %v795, 0
          %v874 = vsel %vm295, %v796, 0
          %v877 = vsel %vm295, %v797, 0
          %v880 = vsel %vm295, %v798, 0
          %v883 = vsel %vm295, %v799, 0
          %v886 = vsel %vm295, %v800, 0
          %v889 = vsel %vm295, %v801, 0
          %v892 = vsel %vm295, %v802, 0
          %v895 = vsel %vm295, %v803, 0
          %v898 = vsel %vm295, %v804, 0
          %v901 = vsel %vm295, %v805, 0
          %v904 = vsel %vm295, %v806, 0
          %v907 = vsel %vm295, %v807, 0
          %vm909 = vcmask 1043456
          %v910 = vsel %vm909, %v811, 0
          %v912 = vsel %vm909, %v812, 0
          %914 = vmatpush.msra.mxu0 0.0
          %915 = vmatpush.msra.mxu0 0.0
          %916 = vmatpush.msra.mxu0 0.0
          %917 = vmatpush.msra.mxu0 0.0
          %918 = vmatpush.msra.mxu0 0.0
          %919 = vmatpush.msra.mxu0 0.0
          %920 = vmatpush.msra.mxu0 0.0
          %921 = vmatpush.msra.mxu0 0.0
          %922 = vmatpush.msra.mxu0 0.0
          %923 = vmatpush.msra.mxu0 0.0
          %924 = vmatpush.msra.mxu0 0.0
          %925 = vmatpush.msra.mxu0 0.0
          %926 = vmatpush.msra.mxu0 0.0
          %927 = vmatpush.msra.mxu0 0.0
          %928 = vmatpush.msra.mxu0 0.0
          %929 = vmatpush.msra.mxu0 %v910
          %930 = vmatmul.f32.gmra.mxu0 %v814
          %v931 = vpop.f32.mrf.mxu0
          %v932 = vadd.f32 0.0, %v931
          %933 = vmatmul.f32.gmra.mxu0 %v817
          %v934 = vpop.f32.mrf.mxu0
          %v935 = vadd.f32 0.0, %v934
          %936 = vmatmul.f32.gmra.mxu0 %v820
          %v937 = vpop.f32.mrf.mxu0
          %v938 = vadd.f32 0.0, %v937
          %939 = vmatmul.f32.gmra.mxu0 %v823
          %v940 = vpop.f32.mrf.mxu0
          %v941 = vadd.f32 0.0, %v940
          %942 = vmatmul.f32.gmra.mxu0 %v826
          %v943 = vpop.f32.mrf.mxu0
          %v944 = vadd.f32 0.0, %v943
          %945 = vmatmul.f32.gmra.mxu0 %v829
          %v946 = vpop.f32.mrf.mxu0
          %v947 = vadd.f32 0.0, %v946
          %948 = vmatmul.f32.gmra.mxu0 %v832
          %v949 = vpop.f32.mrf.mxu0
          %v950 = vadd.f32 0.0, %v949
          %951 = vmatmul.f32.gmra.mxu0 %v835
          %v952 = vpop.f32.mrf.mxu0
          %v953 = vadd.f32 0.0, %v952
          %954 = vmatmul.f32.gmra.mxu0 %v838
          %v955 = vpop.f32.mrf.mxu0
          %v956 = vadd.f32 0.0, %v955
          %957 = vmatmul.f32.gmra.mxu0 %v841
          %v958 = vpop.f32.mrf.mxu0
          %v959 = vadd.f32 0.0, %v958
          %960 = vmatmul.f32.gmra.mxu0 %v844
          %v961 = vpop.f32.mrf.mxu0
          %v962 = vadd.f32 0.0, %v961
          %963 = vmatmul.f32.gmra.mxu0 %v847
          %v964 = vpop.f32.mrf.mxu0
          %v965 = vadd.f32 0.0, %v964
          %966 = vmatmul.f32.gmra.mxu0 %v850
          %v967 = vpop.f32.mrf.mxu0
          %v968 = vadd.f32 0.0, %v967
          %969 = vmatmul.f32.gmra.mxu0 %v853
          %v970 = vpop.f32.mrf.mxu0
          %v971 = vadd.f32 0.0, %v970
          %972 = vmatmul.f32.gmra.mxu0 %v856
          %v973 = vpop.f32.mrf.mxu0
          %v974 = vadd.f32 0.0, %v973
          %975 = vmatmul.f32.gmra.mxu0 %v859
          %v976 = vpop.f32.mrf.mxu0
          %v977 = vadd.f32 0.0, %v976
          %978 = vmatmul.f32.gmra.mxu0 %v862
          %v979 = vpop.f32.mrf.mxu0
          %v980 = vadd.f32 0.0, %v979
          %981 = vmatmul.f32.gmra.mxu0 %v865
          %v982 = vpop.f32.mrf.mxu0
          %v983 = vadd.f32 0.0, %v982
          %984 = vmatmul.f32.gmra.mxu0 %v868
          %v985 = vpop.f32.mrf.mxu0
          %v986 = vadd.f32 0.0, %v985
          %987 = vmatmul.f32.gmra.mxu0 %v871
          %v988 = vpop.f32.mrf.mxu0
          %v989 = vadd.f32 0.0, %v988
          %990 = vmatmul.f32.gmra.mxu0 %v874
          %v991 = vpop.f32.mrf.mxu0
          %v992 = vadd.f32 0.0, %v991
          %993 = vmatmul.f32.gmra.mxu0 %v877
          %v994 = vpop.f32.mrf.mxu0
          %v995 = vadd.f32 0.0, %v994
          %996 = vmatmul.f32.gmra.mxu0 %v880
          %v997 = vpop.f32.mrf.mxu0
          %v998 = vadd.f32 0.0, %v997
          %999 = vmatmul.f32.gmra.mxu0 %v883
          %v1000 = vpop.f32.mrf.mxu0
          %v1001 = vadd.f32 0.0, %v1000
          %1002 = vmatmul.f32.gmra.mxu0 %v886
          %v1003 = vpop.f32.mrf.mxu0
          %v1004 = vadd.f32 0.0, %v1003
          %1005 = vmatmul.f32.gmra.mxu0 %v889
          %v1006 = vpop.f32.mrf.mxu0
          %v1007 = vadd.f32 0.0, %v1006
          %1008 = vmatmul.f32.gmra.mxu0 %v892
          %v1009 = vpop.f32.mrf.mxu0
          %v1010 = vadd.f32 0.0, %v1009
          %1011 = vmatmul.f32.gmra.mxu0 %v895
          %v1012 = vpop.f32.mrf.mxu0
          %v1013 = vadd.f32 0.0, %v1012
          %1014 = vmatmul.f32.gmra.mxu0 %v898
          %v1015 = vpop.f32.mrf.mxu0
          %v1016 = vadd.f32 0.0, %v1015
          %1017 = vmatmul.f32.gmra.mxu0 %v901
          %v1018 = vpop.f32.mrf.mxu0
          %v1019 = vadd.f32 0.0, %v1018
          %1020 = vmatmul.f32.gmra.mxu0 %v904
          %v1021 = vpop.f32.mrf.mxu0
          %v1022 = vadd.f32 0.0, %v1021
          %1023 = vmatmul.f32.gmra.mxu0 %v907
          %v1024 = vpop.f32.mrf.mxu0
          %v1025 = vadd.f32 0.0, %v1024
          %1026 = vdwg.mxu0
          %1027 = vmatpush.msra.mxu0 0.0
          %1028 = vmatpush.msra.mxu0 0.0
          %1029 = vmatpush.msra.mxu0 0.0
          %1030 = vmatpush.msra.mxu0 0.0
          %1031 = vmatpush.msra.mxu0 0.0
          %1032 = vmatpush.msra.mxu0 0.0
          %1033 = vmatpush.msra.mxu0 0.0
          %1034 = vmatpush.msra.mxu0 0.0
          %1035 = vmatpush.msra.mxu0 0.0
          %1036 = vmatpush.msra.mxu0 0.0
          %1037 = vmatpush.msra.mxu0 0.0
          %1038 = vmatpush.msra.mxu0 0.0
          %1039 = vmatpush.msra.mxu0 0.0
          %1040 = vmatpush.msra.mxu0 0.0
          %1041 = vmatpush.msra.mxu0 0.0
          %1042 = vmatpush.msra.mxu0 %v912
          %1043 = vmatmul.f32.gmra.mxu0 %v814
          %v1044 = vpop.f32.mrf.mxu0
          %v1045 = vadd.f32 0.0, %v1044
          %1046 = vmatmul.f32.gmra.mxu0 %v817
          %v1047 = vpop.f32.mrf.mxu0
          %v1048 = vadd.f32 0.0, %v1047
          %1049 = vmatmul.f32.gmra.mxu0 %v820
          %v1050 = vpop.f32.mrf.mxu0
          %v1051 = vadd.f32 0.0, %v1050
          %1052 = vmatmul.f32.gmra.mxu0 %v823
          %v1053 = vpop.f32.mrf.mxu0
          %v1054 = vadd.f32 0.0, %v1053
          %1055 = vmatmul.f32.gmra.mxu0 %v826
          %v1056 = vpop.f32.mrf.mxu0
          %v1057 = vadd.f32 0.0, %v1056
          %1058 = vmatmul.f32.gmra.mxu0 %v829
          %v1059 = vpop.f32.mrf.mxu0
          %v1060 = vadd.f32 0.0, %v1059
          %1061 = vmatmul.f32.gmra.mxu0 %v832
          %v1062 = vpop.f32.mrf.mxu0
          %v1063 = vadd.f32 0.0, %v1062
          %1064 = vmatmul.f32.gmra.mxu0 %v835
          %v1065 = vpop.f32.mrf.mxu0
          %v1066 = vadd.f32 0.0, %v1065
          %1067 = vmatmul.f32.gmra.mxu0 %v838
          %v1068 = vpop.f32.mrf.mxu0
          %v1069 = vadd.f32 0.0, %v1068
          %1070 = vmatmul.f32.gmra.mxu0 %v841
          %v1071 = vpop.f32.mrf.mxu0
          %v1072 = vadd.f32 0.0, %v1071
          %1073 = vmatmul.f32.gmra.mxu0 %v844
          %v1074 = vpop.f32.mrf.mxu0
          %v1075 = vadd.f32 0.0, %v1074
          %1076 = vmatmul.f32.gmra.mxu0 %v847
          %v1077 = vpop.f32.mrf.mxu0
          %v1078 = vadd.f32 0.0, %v1077
          %1079 = vmatmul.f32.gmra.mxu0 %v850
          %v1080 = vpop.f32.mrf.mxu0
          %v1081 = vadd.f32 0.0, %v1080
          %1082 = vmatmul.f32.gmra.mxu0 %v853
          %v1083 = vpop.f32.mrf.mxu0
          %v1084 = vadd.f32 0.0, %v1083
          %1085 = vmatmul.f32.gmra.mxu0 %v856
          %v1086 = vpop.f32.mrf.mxu0
          %v1087 = vadd.f32 0.0, %v1086
          %1088 = vmatmul.f32.gmra.mxu0 %v859
          %v1089 = vpop.f32.mrf.mxu0
          %v1090 = vadd.f32 0.0, %v1089
          %1091 = vmatmul.f32.gmra.mxu0 %v862
          %v1092 = vpop.f32.mrf.mxu0
          %v1093 = vadd.f32 0.0, %v1092
          %1094 = vmatmul.f32.gmra.mxu0 %v865
          %v1095 = vpop.f32.mrf.mxu0
          %v1096 = vadd.f32 0.0, %v1095
          %1097 = vmatmul.f32.gmra.mxu0 %v868
          %v1098 = vpop.f32.mrf.mxu0
          %v1099 = vadd.f32 0.0, %v1098
          %1100 = vmatmul.f32.gmra.mxu0 %v871
          %v1101 = vpop.f32.mrf.mxu0
          %v1102 = vadd.f32 0.0, %v1101
          %1103 = vmatmul.f32.gmra.mxu0 %v874
          %v1104 = vpop.f32.mrf.mxu0
          %v1105 = vadd.f32 0.0, %v1104
          %1106 = vmatmul.f32.gmra.mxu0 %v877
          %v1107 = vpop.f32.mrf.mxu0
          %v1108 = vadd.f32 0.0, %v1107
          %1109 = vmatmul.f32.gmra.mxu0 %v880
          %v1110 = vpop.f32.mrf.mxu0
          %v1111 = vadd.f32 0.0, %v1110
          %1112 = vmatmul.f32.gmra.mxu0 %v883
          %v1113 = vpop.f32.mrf.mxu0
          %v1114 = vadd.f32 0.0, %v1113
          %1115 = vmatmul.f32.gmra.mxu0 %v886
          %v1116 = vpop.f32.mrf.mxu0
          %v1117 = vadd.f32 0.0, %v1116
          %1118 = vmatmul.f32.gmra.mxu0 %v889
          %v1119 = vpop.f32.mrf.mxu0
          %v1120 = vadd.f32 0.0, %v1119
          %1121 = vmatmul.f32.gmra.mxu0 %v892
          %v1122 = vpop.f32.mrf.mxu0
          %v1123 = vadd.f32 0.0, %v1122
          %1124 = vmatmul.f32.gmra.mxu0 %v895
          %v1125 = vpop.f32.mrf.mxu0
          %v1126 = vadd.f32 0.0, %v1125
          %1127 = vmatmul.f32.gmra.mxu0 %v898
          %v1128 = vpop.f32.mrf.mxu0
          %v1129 = vadd.f32 0.0, %v1128
          %1130 = vmatmul.f32.gmra.mxu0 %v901
          %v1131 = vpop.f32.mrf.mxu0
          %v1132 = vadd.f32 0.0, %v1131
          %1133 = vmatmul.f32.gmra.mxu0 %v904
          %v1134 = vpop.f32.mrf.mxu0
          %v1135 = vadd.f32 0.0, %v1134
          %1136 = vmatmul.f32.gmra.mxu0 %v907
          %v1137 = vpop.f32.mrf.mxu0
          %v1138 = vadd.f32 0.0, %v1137
          %1139 = vdwg.mxu0
          %v1140 = vsub.f32 %v932, 10.0
          %v1141 = vsub.f32 %v1045, 10.0
          %v1142 = vsub.f32 %v935, 10.0
          %v1143 = vsub.f32 %v1048, 10.0
          %v1144 = vsub.f32 %v938, 10.0
          %v1145 = vsub.f32 %v1051, 10.0
          %v1146 = vsub.f32 %v941, 10.0
          %v1147 = vsub.f32 %v1054, 10.0
          %v1148 = vsub.f32 %v944, 10.0
          %v1149 = vsub.f32 %v1057, 10.0
          %v1150 = vsub.f32 %v947, 10.0
          %v1151 = vsub.f32 %v1060, 10.0
          %v1152 = vsub.f32 %v950, 10.0
          %v1153 = vsub.f32 %v1063, 10.0
          %v1154 = vsub.f32 %v953, 10.0
          %v1155 = vsub.f32 %v1066, 10.0
          %v1156 = vsub.f32 %v956, 10.0
          %v1157 = vsub.f32 %v1069, 10.0
          %v1158 = vsub.f32 %v959, 10.0
          %v1159 = vsub.f32 %v1072, 10.0
          %v1160 = vsub.f32 %v962, 10.0
          %v1161 = vsub.f32 %v1075, 10.0
          %v1162 = vsub.f32 %v965, 10.0
          %v1163 = vsub.f32 %v1078, 10.0
          %v1164 = vsub.f32 %v968, 10.0
          %v1165 = vsub.f32 %v1081, 10.0
          %v1166 = vsub.f32 %v971, 10.0
          %v1167 = vsub.f32 %v1084, 10.0
          %v1168 = vsub.f32 %v974, 10.0
          %v1169 = vsub.f32 %v1087, 10.0
          %v1170 = vsub.f32 %v977, 10.0
          %v1171 = vsub.f32 %v1090, 10.0
          %v1172 = vsub.f32 %v980, 10.0
          %v1173 = vsub.f32 %v1093, 10.0
          %v1174 = vsub.f32 %v983, 10.0
          %v1175 = vsub.f32 %v1096, 10.0
          %v1176 = vsub.f32 %v986, 10.0
          %v1177 = vsub.f32 %v1099, 10.0
          %v1178 = vsub.f32 %v989, 10.0
          %v1179 = vsub.f32 %v1102, 10.0
          %v1180 = vsub.f32 %v992, 10.0
          %v1181 = vsub.f32 %v1105, 10.0
          %v1182 = vsub.f32 %v995, 10.0
          %v1183 = vsub.f32 %v1108, 10.0
          %v1184 = vsub.f32 %v998, 10.0
          %v1185 = vsub.f32 %v1111, 10.0
          %v1186 = vsub.f32 %v1001, 10.0
          %v1187 = vsub.f32 %v1114, 10.0
          %v1188 = vsub.f32 %v1004, 10.0
          %v1189 = vsub.f32 %v1117, 10.0
          %v1190 = vsub.f32 %v1007, 10.0
          %v1191 = vsub.f32 %v1120, 10.0
          %v1192 = vsub.f32 %v1010, 10.0
          %v1193 = vsub.f32 %v1123, 10.0
          %v1194 = vsub.f32 %v1013, 10.0
          %v1195 = vsub.f32 %v1126, 10.0
          %v1196 = vsub.f32 %v1016, 10.0
          %v1197 = vsub.f32 %v1129, 10.0
          %v1198 = vsub.f32 %v1019, 10.0
          %v1199 = vsub.f32 %v1132, 10.0
          %v1200 = vsub.f32 %v1022, 10.0
          %v1201 = vsub.f32 %v1135, 10.0
          %v1202 = vsub.f32 %v1025, 10.0
          %v1203 = vsub.f32 %v1138, 10.0
          %v1204 = vmul.f32 %v1140, 1.442695
          %v1205 = vpow.pop %v1204
          %v1206 = vmul.f32 %v1141, 1.442695
          %v1207 = vpow.pop %v1206
          %v1208 = vmul.f32 %v1142, 1.442695
          %v1209 = vpow.pop %v1208
          %v1210 = vmul.f32 %v1143, 1.442695
          %v1211 = vpow.pop %v1210
          %v1212 = vmul.f32 %v1144, 1.442695
          %v1213 = vpow.pop %v1212
          %v1214 = vmul.f32 %v1145, 1.442695
          %v1215 = vpow.pop %v1214
          %v1216 = vmul.f32 %v1146, 1.442695
          %v1217 = vpow.pop %v1216
          %v1218 = vmul.f32 %v1147, 1.442695
          %v1219 = vpow.pop %v1218
          %v1220 = vmul.f32 %v1148, 1.442695
          %v1221 = vpow.pop %v1220
          %v1222 = vmul.f32 %v1149, 1.442695
          %v1223 = vpow.pop %v1222
          %v1224 = vmul.f32 %v1150, 1.442695
          %v1225 = vpow.pop %v1224
          %v1226 = vmul.f32 %v1151, 1.442695
          %v1227 = vpow.pop %v1226
          %v1228 = vmul.f32 %v1152, 1.442695
          %v1229 = vpow.pop %v1228
          %v1230 = vmul.f32 %v1153, 1.442695
          %v1231 = vpow.pop %v1230
          %v1232 = vmul.f32 %v1154, 1.442695
          %v1233 = vpow.pop %v1232
          %v1234 = vmul.f32 %v1155, 1.442695
          %v1235 = vpow.pop %v1234
          %v1236 = vmul.f32 %v1156, 1.442695
          %v1237 = vpow.pop %v1236
          %v1238 = vmul.f32 %v1157, 1.442695
          %v1239 = vpow.pop %v1238
          %v1240 = vmul.f32 %v1158, 1.442695
          %v1241 = vpow.pop %v1240
          %v1242 = vmul.f32 %v1159, 1.442695
          %v1243 = vpow.pop %v1242
          %v1244 = vmul.f32 %v1160, 1.442695
          %v1245 = vpow.pop %v1244
          %v1246 = vmul.f32 %v1161, 1.442695
          %v1247 = vpow.pop %v1246
          %v1248 = vmul.f32 %v1162, 1.442695
          %v1249 = vpow.pop %v1248
          %v1250 = vmul.f32 %v1163, 1.442695
          %v1251 = vpow.pop %v1250
          %v1252 = vmul.f32 %v1164, 1.442695
          %v1253 = vpow.pop %v1252
          %v1254 = vmul.f32 %v1165, 1.442695
          %v1255 = vpow.pop %v1254
          %v1256 = vmul.f32 %v1166, 1.442695
          %v1257 = vpow.pop %v1256
          %v1258 = vmul.f32 %v1167, 1.442695
          %v1259 = vpow.pop %v1258
          %v1260 = vmul.f32 %v1168, 1.442695
          %v1261 = vpow.pop %v1260
          %v1262 = vmul.f32 %v1169, 1.442695
          %v1263 = vpow.pop %v1262
          %v1264 = vmul.f32 %v1170, 1.442695
          %v1265 = vpow.pop %v1264
          %v1266 = vmul.f32 %v1171, 1.442695
          %v1267 = vpow.pop %v1266
          %v1268 = vmul.f32 %v1172, 1.442695
          %v1269 = vpow.pop %v1268
          %v1270 = vmul.f32 %v1173, 1.442695
          %v1271 = vpow.pop %v1270
          %v1272 = vmul.f32 %v1174, 1.442695
          %v1273 = vpow.pop %v1272
          %v1274 = vmul.f32 %v1175, 1.442695
          %v1275 = vpow.pop %v1274
          %v1276 = vmul.f32 %v1176, 1.442695
          %v1277 = vpow.pop %v1276
          %v1278 = vmul.f32 %v1177, 1.442695
          %v1279 = vpow.pop %v1278
          %v1280 = vmul.f32 %v1178, 1.442695
          %v1281 = vpow.pop %v1280
          %v1282 = vmul.f32 %v1179, 1.442695
          %v1283 = vpow.pop %v1282
          %v1284 = vmul.f32 %v1180, 1.442695
          %v1285 = vpow.pop %v1284
          %v1286 = vmul.f32 %v1181, 1.442695
          %v1287 = vpow.pop %v1286
          %v1288 = vmul.f32 %v1182, 1.442695
          %v1289 = vpow.pop %v1288
          %v1290 = vmul.f32 %v1183, 1.442695
          %v1291 = vpow.pop %v1290
          %v1292 = vmul.f32 %v1184, 1.442695
          %v1293 = vpow.pop %v1292
          %v1294 = vmul.f32 %v1185, 1.442695
          %v1295 = vpow.pop %v1294
          %v1296 = vmul.f32 %v1186, 1.442695
          %v1297 = vpow.pop %v1296
          %v1298 = vmul.f32 %v1187, 1.442695
          %v1299 = vpow.pop %v1298
          %v1300 = vmul.f32 %v1188, 1.442695
          %v1301 = vpow.pop %v1300
          %v1302 = vmul.f32 %v1189, 1.442695
          %v1303 = vpow.pop %v1302
          %v1304 = vmul.f32 %v1190, 1.442695
          %v1305 = vpow.pop %v1304
          %v1306 = vmul.f32 %v1191, 1.442695
          %v1307 = vpow.pop %v1306
          %v1308 = vmul.f32 %v1192, 1.442695
          %v1309 = vpow.pop %v1308
          %v1310 = vmul.f32 %v1193, 1.442695
          %v1311 = vpow.pop %v1310
          %v1312 = vmul.f32 %v1194, 1.442695
          %v1313 = vpow.pop %v1312
          %v1314 = vmul.f32 %v1195, 1.442695
          %v1315 = vpow.pop %v1314
          %v1316 = vmul.f32 %v1196, 1.442695
          %v1317 = vpow.pop %v1316
          %v1318 = vmul.f32 %v1197, 1.442695
          %v1319 = vpow.pop %v1318
          %v1320 = vmul.f32 %v1198, 1.442695
          %v1321 = vpow.pop %v1320
          %v1322 = vmul.f32 %v1199, 1.442695
          %v1323 = vpow.pop %v1322
          %v1324 = vmul.f32 %v1200, 1.442695
          %v1325 = vpow.pop %v1324
          %v1326 = vmul.f32 %v1201, 1.442695
          %v1327 = vpow.pop %v1326
          %v1328 = vmul.f32 %v1202, 1.442695
          %v1329 = vpow.pop %v1328
          %v1330 = vmul.f32 %v1203, 1.442695
          %v1331 = vpow.pop %v1330
          %v1332 = vld [vmem:[#allocation2] sm:$0x3]
          %v1333 = vadd.f32 %v1205, %v1209
          %v1334 = vadd.f32 %v1333, %v1213
          %v1335 = vadd.f32 %v1334, %v1217
          %v1336 = vadd.f32 %v1335, %v1221
          %v1337 = vadd.f32 %v1336, %v1225
          %v1338 = vadd.f32 %v1337, %v1229
          %v1339 = vadd.f32 %v1338, %v1233
          %v1340 = vadd.f32 %v1339, %v1237
          %v1341 = vadd.f32 %v1340, %v1241
          %v1342 = vadd.f32 %v1341, %v1245
          %v1343 = vadd.f32 %v1342, %v1249
          %v1344 = vadd.f32 %v1343, %v1253
          %v1345 = vadd.f32 %v1344, %v1257
          %v1346 = vadd.f32 %v1345, %v1261
          %v1347 = vadd.f32 %v1346, %v1265
          %v1348 = vadd.f32 %v1347, %v1269
          %v1349 = vadd.f32 %v1348, %v1273
          %v1350 = vadd.f32 %v1349, %v1277
          %v1351 = vadd.f32 %v1350, %v1281
          %v1352 = vadd.f32 %v1351, %v1285
          %v1353 = vadd.f32 %v1352, %v1289
          %v1354 = vadd.f32 %v1353, %v1293
          %v1355 = vadd.f32 %v1354, %v1297
          %v1356 = vadd.f32 %v1355, %v1301
          %v1357 = vadd.f32 %v1356, %v1305
          %v1358 = vadd.f32 %v1357, %v1309
          %v1359 = vadd.f32 %v1358, %v1313
          %v1360 = vadd.f32 %v1359, %v1317
          %v1361 = vadd.f32 %v1360, %v1321
          %v1362 = vadd.f32 %v1361, %v1325
          %v1363 = vadd.f32 %v1362, %v1329
          %v1364 = vrot.slane %v1363, 4
          %v1365 = vadd.f32 %v1363, %v1364
          %v1366 = vrot.slane %v1365, 2
          %v1367 = vadd.f32 %v1365, %v1366
          %v1368 = vrot.slane %v1367, 1
          %v1369 = vadd.f32 %v1367, %v1368
          %v1370 = vadd.f32 %v1207, %v1211
          %v1371 = vadd.f32 %v1370, %v1215
          %v1372 = vadd.f32 %v1371, %v1219
          %v1373 = vadd.f32 %v1372, %v1223
          %v1374 = vadd.f32 %v1373, %v1227
          %v1375 = vadd.f32 %v1374, %v1231
          %v1376 = vadd.f32 %v1375, %v1235
          %v1377 = vadd.f32 %v1376, %v1239
          %v1378 = vadd.f32 %v1377, %v1243
          %v1379 = vadd.f32 %v1378, %v1247
          %v1380 = vadd.f32 %v1379, %v1251
          %v1381 = vadd.f32 %v1380, %v1255
          %v1382 = vadd.f32 %v1381, %v1259
          %v1383 = vadd.f32 %v1382, %v1263
          %v1384 = vadd.f32 %v1383, %v1267
          %v1385 = vadd.f32 %v1384, %v1271
          %v1386 = vadd.f32 %v1385, %v1275
          %v1387 = vadd.f32 %v1386, %v1279
          %v1388 = vadd.f32 %v1387, %v1283
          %v1389 = vadd.f32 %v1388, %v1287
          %v1390 = vadd.f32 %v1389, %v1291
          %v1391 = vadd.f32 %v1390, %v1295
          %v1392 = vadd.f32 %v1391, %v1299
          %v1393 = vadd.f32 %v1392, %v1303
          %v1394 = vadd.f32 %v1393, %v1307
          %v1395 = vadd.f32 %v1394, %v1311
          %v1396 = vadd.f32 %v1395, %v1315
          %v1397 = vadd.f32 %v1396, %v1319
          %v1398 = vadd.f32 %v1397, %v1323
          %v1399 = vadd.f32 %v1398, %v1327
          %v1400 = vadd.f32 %v1399, %v1331
          %v1401 = vrot.slane %v1400, 4
          %v1402 = vadd.f32 %v1400, %v1401
          %v1403 = vrot.slane %v1402, 2
          %v1404 = vadd.f32 %v1402, %v1403
          %v1405 = vrot.slane %v1404, 1
          %v1406 = vadd.f32 %v1404, %v1405
          %v1409 = vrot.slane %v1406, 7
          %vm1410 = vcmask 1040384
          %v1411 = vsel %vm1410, %v1369, %v1409
          %v1413 = vadd.f32 %v1332, %v1411
          %v1414 = vlaneseq
          %vm1415 = vcmp.ge.s32.totalorder %v1414, 0
          %vm1416 = vcmp.lt.s32.totalorder %v1414, 256
          %vm1417 = vmand %vm1415, %vm1416
          %1418 = vst.msk [vmem:[#allocation2] sm:$0x3] %vm1417, %v1413
          %s1419 = smul.u32 %s23, 256
          %s1420 = sshra.s32 %s1419, 3
          %s1421 = sand.u32 %s1419, 7
          %s1422 = smul.u32 %s1420, 2
          %s1423 = smul.addr %s1422, 8
          %s1424 = scalar_lea.vmem [#allocation3], %s1423
          %1425 = vst [vmem:[%s1424] sm:$0xff] %v1205
          %1426 = vst [vmem:[%s1424 + $0x8] sm:$0xff] %v1207
          %1427 = vst [vmem:[%s1424 + $0x10] sm:$0xff] %v1209
          %1428 = vst [vmem:[%s1424 + $0x18] sm:$0xff] %v1211
          %1429 = vst [vmem:[%s1424 + $0x20] sm:$0xff] %v1213
          %1430 = vst [vmem:[%s1424 + $0x28] sm:$0xff] %v1215
          %1431 = vst [vmem:[%s1424 + $0x30] sm:$0xff] %v1217
          %1432 = vst [vmem:[%s1424 + $0x38] sm:$0xff] %v1219
          %1433 = vst [vmem:[%s1424 + $0x40] sm:$0xff] %v1221
          %1434 = vst [vmem:[%s1424 + $0x48] sm:$0xff] %v1223
          %1435 = vst [vmem:[%s1424 + $0x50] sm:$0xff] %v1225
          %1436 = vst [vmem:[%s1424 + $0x58] sm:$0xff] %v1227
          %1437 = vst [vmem:[%s1424 + $0x60] sm:$0xff] %v1229
          %1438 = vst [vmem:[%s1424 + $0x68] sm:$0xff] %v1231
          %1439 = vst [vmem:[%s1424 + $0x70] sm:$0xff] %v1233
          %1440 = vst [vmem:[%s1424 + $0x78] sm:$0xff] %v1235
          %1441 = vst [vmem:[%s1424 + $0x80] sm:$0xff] %v1237
          %1442 = vst [vmem:[%s1424 + $0x88] sm:$0xff] %v1239
          %1443 = vst [vmem:[%s1424 + $0x90] sm:$0xff] %v1241
          %1444 = vst [vmem:[%s1424 + $0x98] sm:$0xff] %v1243
          %1445 = vst [vmem:[%s1424 + $0xa0] sm:$0xff] %v1245
          %1446 = vst [vmem:[%s1424 + $0xa8] sm:$0xff] %v1247
          %1447 = vst [vmem:[%s1424 + $0xb0] sm:$0xff] %v1249
          %1448 = vst [vmem:[%s1424 + $0xb8] sm:$0xff] %v1251
          %1449 = vst [vmem:[%s1424 + $0xc0] sm:$0xff] %v1253
          %1450 = vst [vmem:[%s1424 + $0xc8] sm:$0xff] %v1255
          %1451 = vst [vmem:[%s1424 + $0xd0] sm:$0xff] %v1257
          %1452 = vst [vmem:[%s1424 + $0xd8] sm:$0xff] %v1259
          %1453 = vst [vmem:[%s1424 + $0xe0] sm:$0xff] %v1261
          %1454 = vst [vmem:[%s1424 + $0xe8] sm:$0xff] %v1263
          %1455 = vst [vmem:[%s1424 + $0xf0] sm:$0xff] %v1265
          %1456 = vst [vmem:[%s1424 + $0xf8] sm:$0xff] %v1267
          %1457 = vst [vmem:[%s1424 + $0x100] sm:$0xff] %v1269
          %1458 = vst [vmem:[%s1424 + $0x108] sm:$0xff] %v1271
          %1459 = vst [vmem:[%s1424 + $0x110] sm:$0xff] %v1273
          %1460 = vst [vmem:[%s1424 + $0x118] sm:$0xff] %v1275
          %1461 = vst [vmem:[%s1424 + $0x120] sm:$0xff] %v1277
          %1462 = vst [vmem:[%s1424 + $0x128] sm:$0xff] %v1279
          %1463 = vst [vmem:[%s1424 + $0x130] sm:$0xff] %v1281
          %1464 = vst [vmem:[%s1424 + $0x138] sm:$0xff] %v1283
          %1465 = vst [vmem:[%s1424 + $0x140] sm:$0xff] %v1285
          %1466 = vst [vmem:[%s1424 + $0x148] sm:$0xff] %v1287
          %1467 = vst [vmem:[%s1424 + $0x150] sm:$0xff] %v1289
          %1468 = vst [vmem:[%s1424 + $0x158] sm:$0xff] %v1291
          %1469 = vst [vmem:[%s1424 + $0x160] sm:$0xff] %v1293
          %1470 = vst [vmem:[%s1424 + $0x168] sm:$0xff] %v1295
          %1471 = vst [vmem:[%s1424 + $0x170] sm:$0xff] %v1297
          %1472 = vst [vmem:[%s1424 + $0x178] sm:$0xff] %v1299
          %1473 = vst [vmem:[%s1424 + $0x180] sm:$0xff] %v1301
          %1474 = vst [vmem:[%s1424 + $0x188] sm:$0xff] %v1303
          %1475 = vst [vmem:[%s1424 + $0x190] sm:$0xff] %v1305
          %1476 = vst [vmem:[%s1424 + $0x198] sm:$0xff] %v1307
          %1477 = vst [vmem:[%s1424 + $0x1a0] sm:$0xff] %v1309
          %1478 = vst [vmem:[%s1424 + $0x1a8] sm:$0xff] %v1311
          %1479 = vst [vmem:[%s1424 + $0x1b0] sm:$0xff] %v1313
          %1480 = vst [vmem:[%s1424 + $0x1b8] sm:$0xff] %v1315
          %1481 = vst [vmem:[%s1424 + $0x1c0] sm:$0xff] %v1317
          %1482 = vst [vmem:[%s1424 + $0x1c8] sm:$0xff] %v1319
          %1483 = vst [vmem:[%s1424 + $0x1d0] sm:$0xff] %v1321
          %1484 = vst [vmem:[%s1424 + $0x1d8] sm:$0xff] %v1323
          %1485 = vst [vmem:[%s1424 + $0x1e0] sm:$0xff] %v1325
          %1486 = vst [vmem:[%s1424 + $0x1e8] sm:$0xff] %v1327
          %1487 = vst [vmem:[%s1424 + $0x1f0] sm:$0xff] %v1329
          %1488 = vst [vmem:[%s1424 + $0x1f8] sm:$0xff] %v1331
        $region36: #{tpu_custom_call.1} parent=27 // pred_fallthru
          _
        %p1489 = scmp.eq.s32.totalorder %s22, 1
        // Predicated region
        $region37: #{tpu_custom_call.1} parent=27 // pred_check
          %p1490 = pneg %p1489
        $region38: #{tpu_custom_call.1} parent=27 // pred_check_branch
          %1492 = sbr.rel (%p1490) target = $region40
        $region39: #{tpu_custom_call.1} parent=27 // pred_region
          %s1493 = smul.u32 %s23, 256
          %s1494 = sshra.s32 %s1493, 3
          %s1495 = sand.u32 %s1493, 7
          %s1496 = smul.u32 %s1494, 2
          %s1497 = smul.addr %s1496, 8
          %s1498 = scalar_lea.vmem [#allocation3], %s1497
          %v1499 = vld [vmem:[%s1498] sm:$0xff]
          %v1500 = vld [vmem:[%s1498 + $0x8] sm:$0xff]
          %v1501 = vld [vmem:[%s1498 + $0x10] sm:$0xff]
          %v1502 = vld [vmem:[%s1498 + $0x18] sm:$0xff]
          %v1503 = vld [vmem:[%s1498 + $0x20] sm:$0xff]
          %v1504 = vld [vmem:[%s1498 + $0x28] sm:$0xff]
          %v1505 = vld [vmem:[%s1498 + $0x30] sm:$0xff]
          %v1506 = vld [vmem:[%s1498 + $0x38] sm:$0xff]
          %v1507 = vld [vmem:[%s1498 + $0x40] sm:$0xff]
          %v1508 = vld [vmem:[%s1498 + $0x48] sm:$0xff]
          %v1509 = vld [vmem:[%s1498 + $0x50] sm:$0xff]
          %v1510 = vld [vmem:[%s1498 + $0x58] sm:$0xff]
          %v1511 = vld [vmem:[%s1498 + $0x60] sm:$0xff]
          %v1512 = vld [vmem:[%s1498 + $0x68] sm:$0xff]
          %v1513 = vld [vmem:[%s1498 + $0x70] sm:$0xff]
          %v1514 = vld [vmem:[%s1498 + $0x78] sm:$0xff]
          %v1515 = vld [vmem:[%s1498 + $0x80] sm:$0xff]
          %v1516 = vld [vmem:[%s1498 + $0x88] sm:$0xff]
          %v1517 = vld [vmem:[%s1498 + $0x90] sm:$0xff]
          %v1518 = vld [vmem:[%s1498 + $0x98] sm:$0xff]
          %v1519 = vld [vmem:[%s1498 + $0xa0] sm:$0xff]
          %v1520 = vld [vmem:[%s1498 + $0xa8] sm:$0xff]
          %v1521 = vld [vmem:[%s1498 + $0xb0] sm:$0xff]
          %v1522 = vld [vmem:[%s1498 + $0xb8] sm:$0xff]
          %v1523 = vld [vmem:[%s1498 + $0xc0] sm:$0xff]
          %v1524 = vld [vmem:[%s1498 + $0xc8] sm:$0xff]
          %v1525 = vld [vmem:[%s1498 + $0xd0] sm:$0xff]
          %v1526 = vld [vmem:[%s1498 + $0xd8] sm:$0xff]
          %v1527 = vld [vmem:[%s1498 + $0xe0] sm:$0xff]
          %v1528 = vld [vmem:[%s1498 + $0xe8] sm:$0xff]
          %v1529 = vld [vmem:[%s1498 + $0xf0] sm:$0xff]
          %v1530 = vld [vmem:[%s1498 + $0xf8] sm:$0xff]
          %v1531 = vld [vmem:[%s1498 + $0x100] sm:$0xff]
          %v1532 = vld [vmem:[%s1498 + $0x108] sm:$0xff]
          %v1533 = vld [vmem:[%s1498 + $0x110] sm:$0xff]
          %v1534 = vld [vmem:[%s1498 + $0x118] sm:$0xff]
          %v1535 = vld [vmem:[%s1498 + $0x120] sm:$0xff]
          %v1536 = vld [vmem:[%s1498 + $0x128] sm:$0xff]
          %v1537 = vld [vmem:[%s1498 + $0x130] sm:$0xff]
          %v1538 = vld [vmem:[%s1498 + $0x138] sm:$0xff]
          %v1539 = vld [vmem:[%s1498 + $0x140] sm:$0xff]
          %v1540 = vld [vmem:[%s1498 + $0x148] sm:$0xff]
          %v1541 = vld [vmem:[%s1498 + $0x150] sm:$0xff]
          %v1542 = vld [vmem:[%s1498 + $0x158] sm:$0xff]
          %v1543 = vld [vmem:[%s1498 + $0x160] sm:$0xff]
          %v1544 = vld [vmem:[%s1498 + $0x168] sm:$0xff]
          %v1545 = vld [vmem:[%s1498 + $0x170] sm:$0xff]
          %v1546 = vld [vmem:[%s1498 + $0x178] sm:$0xff]
          %v1547 = vld [vmem:[%s1498 + $0x180] sm:$0xff]
          %v1548 = vld [vmem:[%s1498 + $0x188] sm:$0xff]
          %v1549 = vld [vmem:[%s1498 + $0x190] sm:$0xff]
          %v1550 = vld [vmem:[%s1498 + $0x198] sm:$0xff]
          %v1551 = vld [vmem:[%s1498 + $0x1a0] sm:$0xff]
          %v1552 = vld [vmem:[%s1498 + $0x1a8] sm:$0xff]
          %v1553 = vld [vmem:[%s1498 + $0x1b0] sm:$0xff]
          %v1554 = vld [vmem:[%s1498 + $0x1b8] sm:$0xff]
          %v1555 = vld [vmem:[%s1498 + $0x1c0] sm:$0xff]
          %v1556 = vld [vmem:[%s1498 + $0x1c8] sm:$0xff]
          %v1557 = vld [vmem:[%s1498 + $0x1d0] sm:$0xff]
          %v1558 = vld [vmem:[%s1498 + $0x1d8] sm:$0xff]
          %v1559 = vld [vmem:[%s1498 + $0x1e0] sm:$0xff]
          %v1560 = vld [vmem:[%s1498 + $0x1e8] sm:$0xff]
          %v1561 = vld [vmem:[%s1498 + $0x1f0] sm:$0xff]
          %v1562 = vld [vmem:[%s1498 + $0x1f8] sm:$0xff]
          // Predicated region
          $region41: #{tpu_custom_call.1} parent=39 // pred_check
            %p1563 = pneg %p218
          $region42: #{tpu_custom_call.1} parent=39 // pred_check_branch
            %1565 = sbr.rel (%p1563) target = $region44
          $region43: #{tpu_custom_call.1} parent=39 // pred_region
            %v1566 = vld [vmem:[#allocation2] sm:$0x3]
            %v1567 = vrcp.pop %v1566
            %v1568 = vlaneseq
            %vm1569 = vcmp.ge.s32.totalorder %v1568, 0
            %vm1570 = vcmp.lt.s32.totalorder %v1568, 256
            %vm1571 = vmand %vm1569, %vm1570
            %1572 = vst.msk [vmem:[#allocation2] sm:$0x3] %vm1571, %v1567
          $region44: #{tpu_custom_call.1} parent=39 // pred_fallthru
            _
          %v1573 = vadd.f32 %v1499, %v1500
          %1574 = vadd.xlane.f32.xlu0 %v1573
          %v1575 = vpop.xlane.xlu0 %1574
          %v1576 = vadd.f32 %v1501, %v1502
          %1577 = vadd.xlane.f32.xlu0 %v1576
          %v1578 = vpop.xlane.xlu0 %1577
          %v1579 = vadd.f32 %v1503, %v1504
          %1580 = vadd.xlane.f32.xlu0 %v1579
          %v1581 = vpop.xlane.xlu0 %1580
          %v1582 = vadd.f32 %v1505, %v1506
          %1583 = vadd.xlane.f32.xlu0 %v1582
          %v1584 = vpop.xlane.xlu0 %1583
          %v1585 = vadd.f32 %v1507, %v1508
          %1586 = vadd.xlane.f32.xlu0 %v1585
          %v1587 = vpop.xlane.xlu0 %1586
          %v1588 = vadd.f32 %v1509, %v1510
          %1589 = vadd.xlane.f32.xlu0 %v1588
          %v1590 = vpop.xlane.xlu0 %1589
          %v1591 = vadd.f32 %v1511, %v1512
          %1592 = vadd.xlane.f32.xlu0 %v1591
          %v1593 = vpop.xlane.xlu0 %1592
          %v1594 = vadd.f32 %v1513, %v1514
          %1595 = vadd.xlane.f32.xlu0 %v1594
          %v1596 = vpop.xlane.xlu0 %1595
          %v1597 = vadd.f32 %v1515, %v1516
          %1598 = vadd.xlane.f32.xlu0 %v1597
          %v1599 = vpop.xlane.xlu0 %1598
          %v1600 = vadd.f32 %v1517, %v1518
          %1601 = vadd.xlane.f32.xlu0 %v1600
          %v1602 = vpop.xlane.xlu0 %1601
          %v1603 = vadd.f32 %v1519, %v1520
          %1604 = vadd.xlane.f32.xlu0 %v1603
          %v1605 = vpop.xlane.xlu0 %1604
          %v1606 = vadd.f32 %v1521, %v1522
          %1607 = vadd.xlane.f32.xlu0 %v1606
          %v1608 = vpop.xlane.xlu0 %1607
          %v1609 = vadd.f32 %v1523, %v1524
          %1610 = vadd.xlane.f32.xlu0 %v1609
          %v1611 = vpop.xlane.xlu0 %1610
          %v1612 = vadd.f32 %v1525, %v1526
          %1613 = vadd.xlane.f32.xlu0 %v1612
          %v1614 = vpop.xlane.xlu0 %1613
          %v1615 = vadd.f32 %v1527, %v1528
          %1616 = vadd.xlane.f32.xlu0 %v1615
          %v1617 = vpop.xlane.xlu0 %1616
          %v1618 = vadd.f32 %v1529, %v1530
          %1619 = vadd.xlane.f32.xlu0 %v1618
          %v1620 = vpop.xlane.xlu0 %1619
          %v1621 = vadd.f32 %v1531, %v1532
          %1622 = vadd.xlane.f32.xlu0 %v1621
          %v1623 = vpop.xlane.xlu0 %1622
          %v1624 = vadd.f32 %v1533, %v1534
          %1625 = vadd.xlane.f32.xlu0 %v1624
          %v1626 = vpop.xlane.xlu0 %1625
          %v1627 = vadd.f32 %v1535, %v1536
          %1628 = vadd.xlane.f32.xlu0 %v1627
          %v1629 = vpop.xlane.xlu0 %1628
          %v1630 = vadd.f32 %v1537, %v1538
          %1631 = vadd.xlane.f32.xlu0 %v1630
          %v1632 = vpop.xlane.xlu0 %1631
          %v1633 = vadd.f32 %v1539, %v1540
          %1634 = vadd.xlane.f32.xlu0 %v1633
          %v1635 = vpop.xlane.xlu0 %1634
          %v1636 = vadd.f32 %v1541, %v1542
          %1637 = vadd.xlane.f32.xlu0 %v1636
          %v1638 = vpop.xlane.xlu0 %1637
          %v1639 = vadd.f32 %v1543, %v1544
          %1640 = vadd.xlane.f32.xlu0 %v1639
          %v1641 = vpop.xlane.xlu0 %1640
          %v1642 = vadd.f32 %v1545, %v1546
          %1643 = vadd.xlane.f32.xlu0 %v1642
          %v1644 = vpop.xlane.xlu0 %1643
          %v1645 = vadd.f32 %v1547, %v1548
          %1646 = vadd.xlane.f32.xlu0 %v1645
          %v1647 = vpop.xlane.xlu0 %1646
          %v1648 = vadd.f32 %v1549, %v1550
          %1649 = vadd.xlane.f32.xlu0 %v1648
          %v1650 = vpop.xlane.xlu0 %1649
          %v1651 = vadd.f32 %v1551, %v1552
          %1652 = vadd.xlane.f32.xlu0 %v1651
          %v1653 = vpop.xlane.xlu0 %1652
          %v1654 = vadd.f32 %v1553, %v1554
          %1655 = vadd.xlane.f32.xlu0 %v1654
          %v1656 = vpop.xlane.xlu0 %1655
          %v1657 = vadd.f32 %v1555, %v1556
          %1658 = vadd.xlane.f32.xlu0 %v1657
          %v1659 = vpop.xlane.xlu0 %1658
          %v1660 = vadd.f32 %v1557, %v1558
          %1661 = vadd.xlane.f32.xlu0 %v1660
          %v1662 = vpop.xlane.xlu0 %1661
          %v1663 = vadd.f32 %v1559, %v1560
          %1664 = vadd.xlane.f32.xlu0 %v1663
          %v1665 = vpop.xlane.xlu0 %1664
          %v1666 = vadd.f32 %v1561, %v1562
          %1667 = vadd.xlane.f32.xlu0 %v1666
          %v1668 = vpop.xlane.xlu0 %1667
          %v1669 = vrcp.pop %v1575
          %v1670 = vrcp.pop %v1578
          %v1671 = vrcp.pop %v1581
          %v1672 = vrcp.pop %v1584
          %v1673 = vrcp.pop %v1587
          %v1674 = vrcp.pop %v1590
          %v1675 = vrcp.pop %v1593
          %v1676 = vrcp.pop %v1596
          %v1677 = vrcp.pop %v1599
          %v1678 = vrcp.pop %v1602
          %v1679 = vrcp.pop %v1605
          %v1680 = vrcp.pop %v1608
          %v1681 = vrcp.pop %v1611
          %v1682 = vrcp.pop %v1614
          %v1683 = vrcp.pop %v1617
          %v1684 = vrcp.pop %v1620
          %v1685 = vrcp.pop %v1623
          %v1686 = vrcp.pop %v1626
          %v1687 = vrcp.pop %v1629
          %v1688 = vrcp.pop %v1632
          %v1689 = vrcp.pop %v1635
          %v1690 = vrcp.pop %v1638
          %v1691 = vrcp.pop %v1641
          %v1692 = vrcp.pop %v1644
          %v1693 = vrcp.pop %v1647
          %v1694 = vrcp.pop %v1650
          %v1695 = vrcp.pop %v1653
          %v1696 = vrcp.pop %v1656
          %v1697 = vrcp.pop %v1659
          %v1698 = vrcp.pop %v1662
          %v1699 = vrcp.pop %v1665
          %v1700 = vrcp.pop %v1668
          %v1701 = vmul.f32 %v1499, %v1669
          %v1702 = vmul.f32 %v1500, %v1669
          %v1703 = vmul.f32 %v1501, %v1670
          %v1704 = vmul.f32 %v1502, %v1670
          %v1705 = vmul.f32 %v1503, %v1671
          %v1706 = vmul.f32 %v1504, %v1671
          %v1707 = vmul.f32 %v1505, %v1672
          %v1708 = vmul.f32 %v1506, %v1672
          %v1709 = vmul.f32 %v1507, %v1673
          %v1710 = vmul.f32 %v1508, %v1673
          %v1711 = vmul.f32 %v1509, %v1674
          %v1712 = vmul.f32 %v1510, %v1674
          %v1713 = vmul.f32 %v1511, %v1675
          %v1714 = vmul.f32 %v1512, %v1675
          %v1715 = vmul.f32 %v1513, %v1676
          %v1716 = vmul.f32 %v1514, %v1676
          %v1717 = vmul.f32 %v1515, %v1677
          %v1718 = vmul.f32 %v1516, %v1677
          %v1719 = vmul.f32 %v1517, %v1678
          %v1720 = vmul.f32 %v1518, %v1678
          %v1721 = vmul.f32 %v1519, %v1679
          %v1722 = vmul.f32 %v1520, %v1679
          %v1723 = vmul.f32 %v1521, %v1680
          %v1724 = vmul.f32 %v1522, %v1680
          %v1725 = vmul.f32 %v1523, %v1681
          %v1726 = vmul.f32 %v1524, %v1681
          %v1727 = vmul.f32 %v1525, %v1682
          %v1728 = vmul.f32 %v1526, %v1682
          %v1729 = vmul.f32 %v1527, %v1683
          %v1730 = vmul.f32 %v1528, %v1683
          %v1731 = vmul.f32 %v1529, %v1684
          %v1732 = vmul.f32 %v1530, %v1684
          %v1733 = vmul.f32 %v1531, %v1685
          %v1734 = vmul.f32 %v1532, %v1685
          %v1735 = vmul.f32 %v1533, %v1686
          %v1736 = vmul.f32 %v1534, %v1686
          %v1737 = vmul.f32 %v1535, %v1687
          %v1738 = vmul.f32 %v1536, %v1687
          %v1739 = vmul.f32 %v1537, %v1688
          %v1740 = vmul.f32 %v1538, %v1688
          %v1741 = vmul.f32 %v1539, %v1689
          %v1742 = vmul.f32 %v1540, %v1689
          %v1743 = vmul.f32 %v1541, %v1690
          %v1744 = vmul.f32 %v1542, %v1690
          %v1745 = vmul.f32 %v1543, %v1691
          %v1746 = vmul.f32 %v1544, %v1691
          %v1747 = vmul.f32 %v1545, %v1692
          %v1748 = vmul.f32 %v1546, %v1692
          %v1749 = vmul.f32 %v1547, %v1693
          %v1750 = vmul.f32 %v1548, %v1693
          %v1751 = vmul.f32 %v1549, %v1694
          %v1752 = vmul.f32 %v1550, %v1694
          %v1753 = vmul.f32 %v1551, %v1695
          %v1754 = vmul.f32 %v1552, %v1695
          %v1755 = vmul.f32 %v1553, %v1696
          %v1756 = vmul.f32 %v1554, %v1696
          %v1757 = vmul.f32 %v1555, %v1697
          %v1758 = vmul.f32 %v1556, %v1697
          %v1759 = vmul.f32 %v1557, %v1698
          %v1760 = vmul.f32 %v1558, %v1698
          %v1761 = vmul.f32 %v1559, %v1699
          %v1762 = vmul.f32 %v1560, %v1699
          %v1763 = vmul.f32 %v1561, %v1700
          %v1764 = vmul.f32 %v1562, %v1700
          %v1765 = vld [vmem:[#allocation2] sm:$0x3]
          %v1767 = vperm.slane %v1765, 0
          %v1768 = vperm.slane %v1765, 1
          %v1771 = vmul.f32 %v1499, %v1767
          %v1772 = vmul.f32 %v1500, %v1768
          %v1773 = vmul.f32 %v1501, %v1767
          %v1774 = vmul.f32 %v1502, %v1768
          %v1775 = vmul.f32 %v1503, %v1767
          %v1776 = vmul.f32 %v1504, %v1768
          %v1777 = vmul.f32 %v1505, %v1767
          %v1778 = vmul.f32 %v1506, %v1768
          %v1779 = vmul.f32 %v1507, %v1767
          %v1780 = vmul.f32 %v1508, %v1768
          %v1781 = vmul.f32 %v1509, %v1767
          %v1782 = vmul.f32 %v1510, %v1768
          %v1783 = vmul.f32 %v1511, %v1767
          %v1784 = vmul.f32 %v1512, %v1768
          %v1785 = vmul.f32 %v1513, %v1767
          %v1786 = vmul.f32 %v1514, %v1768
          %v1787 = vmul.f32 %v1515, %v1767
          %v1788 = vmul.f32 %v1516, %v1768
          %v1789 = vmul.f32 %v1517, %v1767
          %v1790 = vmul.f32 %v1518, %v1768
          %v1791 = vmul.f32 %v1519, %v1767
          %v1792 = vmul.f32 %v1520, %v1768
          %v1793 = vmul.f32 %v1521, %v1767
          %v1794 = vmul.f32 %v1522, %v1768
          %v1795 = vmul.f32 %v1523, %v1767
          %v1796 = vmul.f32 %v1524, %v1768
          %v1797 = vmul.f32 %v1525, %v1767
          %v1798 = vmul.f32 %v1526, %v1768
          %v1799 = vmul.f32 %v1527, %v1767
          %v1800 = vmul.f32 %v1528, %v1768
          %v1801 = vmul.f32 %v1529, %v1767
          %v1802 = vmul.f32 %v1530, %v1768
          %v1803 = vmul.f32 %v1531, %v1767
          %v1804 = vmul.f32 %v1532, %v1768
          %v1805 = vmul.f32 %v1533, %v1767
          %v1806 = vmul.f32 %v1534, %v1768
          %v1807 = vmul.f32 %v1535, %v1767
          %v1808 = vmul.f32 %v1536, %v1768
          %v1809 = vmul.f32 %v1537, %v1767
          %v1810 = vmul.f32 %v1538, %v1768
          %v1811 = vmul.f32 %v1539, %v1767
          %v1812 = vmul.f32 %v1540, %v1768
          %v1813 = vmul.f32 %v1541, %v1767
          %v1814 = vmul.f32 %v1542, %v1768
          %v1815 = vmul.f32 %v1543, %v1767
          %v1816 = vmul.f32 %v1544, %v1768
          %v1817 = vmul.f32 %v1545, %v1767
          %v1818 = vmul.f32 %v1546, %v1768
          %v1819 = vmul.f32 %v1547, %v1767
          %v1820 = vmul.f32 %v1548, %v1768
          %v1821 = vmul.f32 %v1549, %v1767
          %v1822 = vmul.f32 %v1550, %v1768
          %v1823 = vmul.f32 %v1551, %v1767
          %v1824 = vmul.f32 %v1552, %v1768
          %v1825 = vmul.f32 %v1553, %v1767
          %v1826 = vmul.f32 %v1554, %v1768
          %v1827 = vmul.f32 %v1555, %v1767
          %v1828 = vmul.f32 %v1556, %v1768
          %v1829 = vmul.f32 %v1557, %v1767
          %v1830 = vmul.f32 %v1558, %v1768
          %v1831 = vmul.f32 %v1559, %v1767
          %v1832 = vmul.f32 %v1560, %v1768
          %v1833 = vmul.f32 %v1561, %v1767
          %v1834 = vmul.f32 %v1562, %v1768
          %v1835 = vmul.f32 %v1701, %v1771
          %v1836 = vmul.f32 %v1702, %v1772
          %v1837 = vmul.f32 %v1703, %v1773
          %v1838 = vmul.f32 %v1704, %v1774
          %v1839 = vmul.f32 %v1705, %v1775
          %v1840 = vmul.f32 %v1706, %v1776
          %v1841 = vmul.f32 %v1707, %v1777
          %v1842 = vmul.f32 %v1708, %v1778
          %v1843 = vmul.f32 %v1709, %v1779
          %v1844 = vmul.f32 %v1710, %v1780
          %v1845 = vmul.f32 %v1711, %v1781
          %v1846 = vmul.f32 %v1712, %v1782
          %v1847 = vmul.f32 %v1713, %v1783
          %v1848 = vmul.f32 %v1714, %v1784
          %v1849 = vmul.f32 %v1715, %v1785
          %v1850 = vmul.f32 %v1716, %v1786
          %v1851 = vmul.f32 %v1717, %v1787
          %v1852 = vmul.f32 %v1718, %v1788
          %v1853 = vmul.f32 %v1719, %v1789
          %v1854 = vmul.f32 %v1720, %v1790
          %v1855 = vmul.f32 %v1721, %v1791
          %v1856 = vmul.f32 %v1722, %v1792
          %v1857 = vmul.f32 %v1723, %v1793
          %v1858 = vmul.f32 %v1724, %v1794
          %v1859 = vmul.f32 %v1725, %v1795
          %v1860 = vmul.f32 %v1726, %v1796
          %v1861 = vmul.f32 %v1727, %v1797
          %v1862 = vmul.f32 %v1728, %v1798
          %v1863 = vmul.f32 %v1729, %v1799
          %v1864 = vmul.f32 %v1730, %v1800
          %v1865 = vmul.f32 %v1731, %v1801
          %v1866 = vmul.f32 %v1732, %v1802
          %v1867 = vmul.f32 %v1733, %v1803
          %v1868 = vmul.f32 %v1734, %v1804
          %v1869 = vmul.f32 %v1735, %v1805
          %v1870 = vmul.f32 %v1736, %v1806
          %v1871 = vmul.f32 %v1737, %v1807
          %v1872 = vmul.f32 %v1738, %v1808
          %v1873 = vmul.f32 %v1739, %v1809
          %v1874 = vmul.f32 %v1740, %v1810
          %v1875 = vmul.f32 %v1741, %v1811
          %v1876 = vmul.f32 %v1742, %v1812
          %v1877 = vmul.f32 %v1743, %v1813
          %v1878 = vmul.f32 %v1744, %v1814
          %v1879 = vmul.f32 %v1745, %v1815
          %v1880 = vmul.f32 %v1746, %v1816
          %v1881 = vmul.f32 %v1747, %v1817
          %v1882 = vmul.f32 %v1748, %v1818
          %v1883 = vmul.f32 %v1749, %v1819
          %v1884 = vmul.f32 %v1750, %v1820
          %v1885 = vmul.f32 %v1751, %v1821
          %v1886 = vmul.f32 %v1752, %v1822
          %v1887 = vmul.f32 %v1753, %v1823
          %v1888 = vmul.f32 %v1754, %v1824
          %v1889 = vmul.f32 %v1755, %v1825
          %v1890 = vmul.f32 %v1756, %v1826
          %v1891 = vmul.f32 %v1757, %v1827
          %v1892 = vmul.f32 %v1758, %v1828
          %v1893 = vmul.f32 %v1759, %v1829
          %v1894 = vmul.f32 %v1760, %v1830
          %v1895 = vmul.f32 %v1761, %v1831
          %v1896 = vmul.f32 %v1762, %v1832
          %v1897 = vmul.f32 %v1763, %v1833
          %v1898 = vmul.f32 %v1764, %v1834
          %1899 = vst [vmem:[%s195] sm:$0xff] %v1835
          %1900 = vst [vmem:[%s195 + $0x8] sm:$0xff] %v1836
          %1901 = vst [vmem:[%s195 + $0x10] sm:$0xff] %v1837
          %1902 = vst [vmem:[%s195 + $0x18] sm:$0xff] %v1838
          %1903 = vst [vmem:[%s195 + $0x20] sm:$0xff] %v1839
          %1904 = vst [vmem:[%s195 + $0x28] sm:$0xff] %v1840
          %1905 = vst [vmem:[%s195 + $0x30] sm:$0xff] %v1841
          %1906 = vst [vmem:[%s195 + $0x38] sm:$0xff] %v1842
          %1907 = vst [vmem:[%s195 + $0x40] sm:$0xff] %v1843
          %1908 = vst [vmem:[%s195 + $0x48] sm:$0xff] %v1844
          %1909 = vst [vmem:[%s195 + $0x50] sm:$0xff] %v1845
          %1910 = vst [vmem:[%s195 + $0x58] sm:$0xff] %v1846
          %1911 = vst [vmem:[%s195 + $0x60] sm:$0xff] %v1847
          %1912 = vst [vmem:[%s195 + $0x68] sm:$0xff] %v1848
          %1913 = vst [vmem:[%s195 + $0x70] sm:$0xff] %v1849
          %1914 = vst [vmem:[%s195 + $0x78] sm:$0xff] %v1850
          %1915 = vst [vmem:[%s195 + $0x80] sm:$0xff] %v1851
          %1916 = vst [vmem:[%s195 + $0x88] sm:$0xff] %v1852
          %1917 = vst [vmem:[%s195 + $0x90] sm:$0xff] %v1853
          %1918 = vst [vmem:[%s195 + $0x98] sm:$0xff] %v1854
          %1919 = vst [vmem:[%s195 + $0xa0] sm:$0xff] %v1855
          %1920 = vst [vmem:[%s195 + $0xa8] sm:$0xff] %v1856
          %1921 = vst [vmem:[%s195 + $0xb0] sm:$0xff] %v1857
          %1922 = vst [vmem:[%s195 + $0xb8] sm:$0xff] %v1858
          %1923 = vst [vmem:[%s195 + $0xc0] sm:$0xff] %v1859
          %1924 = vst [vmem:[%s195 + $0xc8] sm:$0xff] %v1860
          %1925 = vst [vmem:[%s195 + $0xd0] sm:$0xff] %v1861
          %1926 = vst [vmem:[%s195 + $0xd8] sm:$0xff] %v1862
          %1927 = vst [vmem:[%s195 + $0xe0] sm:$0xff] %v1863
          %1928 = vst [vmem:[%s195 + $0xe8] sm:$0xff] %v1864
          %1929 = vst [vmem:[%s195 + $0xf0] sm:$0xff] %v1865
          %1930 = vst [vmem:[%s195 + $0xf8] sm:$0xff] %v1866
          %1931 = vst [vmem:[%s195 + $0x100] sm:$0xff] %v1867
          %1932 = vst [vmem:[%s195 + $0x108] sm:$0xff] %v1868
          %1933 = vst [vmem:[%s195 + $0x110] sm:$0xff] %v1869
          %1934 = vst [vmem:[%s195 + $0x118] sm:$0xff] %v1870
          %1935 = vst [vmem:[%s195 + $0x120] sm:$0xff] %v1871
          %1936 = vst [vmem:[%s195 + $0x128] sm:$0xff] %v1872
          %1937 = vst [vmem:[%s195 + $0x130] sm:$0xff] %v1873
          %1938 = vst [vmem:[%s195 + $0x138] sm:$0xff] %v1874
          %1939 = vst [vmem:[%s195 + $0x140] sm:$0xff] %v1875
          %1940 = vst [vmem:[%s195 + $0x148] sm:$0xff] %v1876
          %1941 = vst [vmem:[%s195 + $0x150] sm:$0xff] %v1877
          %1942 = vst [vmem:[%s195 + $0x158] sm:$0xff] %v1878
          %1943 = vst [vmem:[%s195 + $0x160] sm:$0xff] %v1879
          %1944 = vst [vmem:[%s195 + $0x168] sm:$0xff] %v1880
          %1945 = vst [vmem:[%s195 + $0x170] sm:$0xff] %v1881
          %1946 = vst [vmem:[%s195 + $0x178] sm:$0xff] %v1882
          %1947 = vst [vmem:[%s195 + $0x180] sm:$0xff] %v1883
          %1948 = vst [vmem:[%s195 + $0x188] sm:$0xff] %v1884
          %1949 = vst [vmem:[%s195 + $0x190] sm:$0xff] %v1885
          %1950 = vst [vmem:[%s195 + $0x198] sm:$0xff] %v1886
          %1951 = vst [vmem:[%s195 + $0x1a0] sm:$0xff] %v1887
          %1952 = vst [vmem:[%s195 + $0x1a8] sm:$0xff] %v1888
          %1953 = vst [vmem:[%s195 + $0x1b0] sm:$0xff] %v1889
          %1954 = vst [vmem:[%s195 + $0x1b8] sm:$0xff] %v1890
          %1955 = vst [vmem:[%s195 + $0x1c0] sm:$0xff] %v1891
          %1956 = vst [vmem:[%s195 + $0x1c8] sm:$0xff] %v1892
          %1957 = vst [vmem:[%s195 + $0x1d0] sm:$0xff] %v1893
          %1958 = vst [vmem:[%s195 + $0x1d8] sm:$0xff] %v1894
          %1959 = vst [vmem:[%s195 + $0x1e0] sm:$0xff] %v1895
          %1960 = vst [vmem:[%s195 + $0x1e8] sm:$0xff] %v1896
          %1961 = vst [vmem:[%s195 + $0x1f0] sm:$0xff] %v1897
          %1962 = vst [vmem:[%s195 + $0x1f8] sm:$0xff] %v1898
        $region40: #{tpu_custom_call.1} parent=27 // pred_fallthru
          _
        %s1963 = sand.u32 %s105, 1
        %s1964 = scalar_lea.sflag [#allocation5], %s1963
        %s1965 = sand.u32 %s105, 1
        %s1966 = smul.addr %s1965, 512
        %s1967 = scalar_lea.vmem [#allocation4], %s1966
        // Predicated region
        $region45: #{tpu_custom_call.1} parent=27 // pred_check
          %p1968 = pneg %p115
        $region46: #{tpu_custom_call.1} parent=27 // pred_check_branch
          %1970 = sbr.rel (%p1968) target = $region48
        $region47: #{tpu_custom_call.1} parent=27 // pred_region
          %s1971 = smul.u32 %s23, %s22
          %s1972 = smul.u32 32, %s1971
          %1974 = vsyncadd %s1964, 0
          %s1975 = smul.addr %s1972, 2
          %s1976 = smul.addr %s21, 64
          %s1977 = sadd.s32 %s1975, %s1976
          %s1978 = smul.addr %s1977, 8
          %s1979 = scalar_lea.hbm %s2, %s1978
          %s1980 = sshll.u32 %s1967, 4
          %s1981 = int_to_ptr.vmem [resolvable:$true] %s1980
          %s1982 = sshll.u32 %s1979, 4
          %s1983 = int_to_ptr.hbm [resolvable:$true] %s1982
          %1988 = dma.vmem_to_hbm [thread:$0]  %s1981, 8192, %s1983, %s1964, 256, 256, 16
        $region48: #{tpu_custom_call.1} parent=27 // pred_fallthru
          _
      $region28: #{tpu_custom_call.1} parent=5 // pred_fallthru
        _
      %p1989 = scmp.le.s32.totalorder 2, %s11
      // Predicated region
      $region49: #{tpu_custom_call.1} parent=5 // pred_check
        %p1990 = pneg %p1989
      $region50: #{tpu_custom_call.1} parent=5 // pred_check_branch
        %1992 = sbr.rel (%p1990) target = $region52
      $region51: #{tpu_custom_call.1} parent=5 // pred_region
        %s1993 = ssub.s32 %s11, 2
        // Predicated region
        $region53: #{tpu_custom_call.1} parent=51 // pred_check
          %p1994 = pneg %p121
        $region54: #{tpu_custom_call.1} parent=51 // pred_check_branch
          %1996 = sbr.rel (%p1994) target = $region56
        $region55: #{tpu_custom_call.1} parent=51 // pred_region
          %s1997 = sand.u32 %s106, 1
          %s1998 = scalar_lea.sflag [#allocation5], %s1997
          %s1999 = sand.u32 %s106, 1
          %s2000 = smul.addr %s1999, 512
          %s2001 = scalar_lea.vmem [#allocation4], %s2000
          %2003 = dma.done %s1998, 8192
        $region56: #{tpu_custom_call.1} parent=51 // pred_fallthru
          _
      $region52: #{tpu_custom_call.1} parent=5 // pred_fallthru
        _
    $region6: #{tpu_custom_call.1} parent=1 // loop_footer
      %s15 = sadd.s32 1, %s11
    $region7: #{tpu_custom_call.1} parent=1 // loop_footer_branch
      %10 = sbr.rel target = $region3
    $region8: #{tpu_custom_call.1} parent=1 // loop_exit
      _
    %2004 = vsyncpa [#allocation5], 1
    %s2005 = scalar_lea.sflag [#allocation5], 1
    %2006 = vsyncpa %s2005, 1

</llo_original>
